<compile_context>
chip_gen: v5e
topology: v5e:2x2
jax: 0.10.0
libtpu: 0.0.40
codegen_flags: <defaults>
</compile_context>

<pallas_src>
import numpy as np
import jax
import jax.numpy as jnp
from jax import lax
from jax.experimental import pallas as pl
from jax.experimental.pallas import tpu as pltpu


def _fold_bn(gamma, beta, mean, var, eps=1e-5):
    scale = jnp.asarray(gamma, jnp.float32) / jnp.sqrt(jnp.asarray(var, jnp.float32) + eps)
    bias = jnp.asarray(beta, jnp.float32) - jnp.asarray(mean, jnp.float32) * scale
    return scale, bias


def make_ghost_bottleneck_kernel(H, W, in_chs, mid_chs, out_chs):
    HW = H * W
    init2 = out_chs // 2
    inv_hw = 1.0 / float(HW)
    # Tap order matches host-side weight/mask construction: (dy, dx) for dy,dx in (-1,0,1);
    # index 4 is the centre tap (shift 0).
    offs = [dy * W + dx for dy in (-1, 0, 1) for dx in (-1, 0, 1)]

    def dw3x3(v, w_ref, mask_ref):
        # v: (C, HW) f32.  w_ref: (9, C, 1) BN-folded per-tap weight columns.
        # mask_ref: (9, 1, HW) shared boundary-validity mask (0/1).
        # Each non-centre tap: one lane-roll (XLU) + two vmuls + one vadd (VPU).
        acc = v * w_ref[4]                       # centre tap: mask is all-ones, skip it
        for t, off in enumerate(offs):
            if off == 0:
                continue
            shifted = pltpu.roll(v, (-off) % HW, axis=1)
            acc = acc + (shifted * mask_ref[t]) * w_ref[t]
        return acc

    def kernel(x_ref, mask_ref,
               g1pw_ref, g1b_ref, g1dw_ref,
               serw_ref, serb_ref, seew_ref, seeb_ref,
               g2pw_ref, g2b_ref, g2dw_ref,
               o_ref):
        x = x_ref[0]                                       # (in_chs, HW) f32
        xb = x.astype(jnp.bfloat16)

        # ---------------- ghost1 (relu=True) ----------------
        x1 = jnp.dot(g1pw_ref[...], xb, preferred_element_type=jnp.float32)
        x1 = jnp.maximum(x1 + g1b_ref[0], 0.0)                          # (mid/2, HW)
        x2 = jnp.maximum(dw3x3(x1, g1dw_ref, mask_ref) + g1b_ref[1], 0.0)   # (mid/2, HW)

        # ---------------- SqueezeExcite (per image; channel halves kept split) ----------------
        pooled1 = jnp.sum(x1, axis=1, keepdims=True) * inv_hw           # (mid/2, 1)
        pooled2 = jnp.sum(x2, axis=1, keepdims=True) * inv_hw
        r = jnp.maximum(
            jnp.dot(serw_ref[0], pooled1, preferred_element_type=jnp.float32)
            + jnp.dot(serw_ref[1], pooled2, preferred_element_type=jnp.float32)
            + serb_ref[...], 0.0)                                       # (red, 1)
        # hard_sigmoid constants folded into seew/seeb host-side: gate = clip(e', 0, 1)
        gate1 = jnp.clip(jnp.dot(seew_ref[0], r, preferred_element_type=jnp.float32)
                         + seeb_ref[0], 0.0, 1.0)                       # (mid/2, 1)
        gate2 = jnp.clip(jnp.dot(seew_ref[1], r, preferred_element_type=jnp.float32)
                         + seeb_ref[1], 0.0, 1.0)
        x1g = x1 * gate1                                                # (C,1) broadcast -> free
        x2g = x2 * gate2

        # ---------------- ghost2 (relu=False) ----------------
        y1 = (jnp.dot(g2pw_ref[0], x1g.astype(jnp.bfloat16), preferred_element_type=jnp.float32)
              + jnp.dot(g2pw_ref[1], x2g.astype(jnp.bfloat16), preferred_element_type=jnp.float32)
              + g2b_ref[0])                                             # (out/2, HW)
        y2 = dw3x3(y1, g2dw_ref, mask_ref) + g2b_ref[1]                 # (out/2, HW)

        # identity shortcut (in_chs == out_chs, stride == 1); write halves directly, no concat
        o_ref[0, :init2, :] = y1 + x[:init2, :]
        o_ref[0, init2:out_chs, :] = y2 + x[init2:out_chs, :]

    return kernel


def ghost_bottleneck_pallas(x_nchw, p, mid_chs=32, out_chs=16):
    N, Cin, H, W = x_nchw.shape
    assert mid_chs % 2 == 0 and out_chs % 2 == 0 and Cin == out_chs
    HW = H * W
    # HW=256 is a lane-multiple, so no batch-folding is needed: grid=(N,), slab (C, HW).
    assert HW % 128 == 0, "this kernel assumes a lane-dense spatial extent (HW % 128 == 0)"
    init1 = mid_chs // 2
    init2 = out_chs // 2

    # ---- fold BN (inference) into conv weights / bias columns (host-side, free) ----
    g1s1, g1b1 = _fold_bn(*p['g1_bn1'])
    g1s2, g1b2 = _fold_bn(*p['g1_bn2'])
    g2s1, g2b1 = _fold_bn(*p['g2_bn1'])
    g2s2, g2b2 = _fold_bn(*p['g2_bn2'])

    g1_pw = (g1s1[:, None] * jnp.asarray(p['g1_pw'], jnp.float32)).astype(jnp.bfloat16)   # (mid/2, Cin)
    g2_pw_f = g2s1[:, None] * jnp.asarray(p['g2_pw'], jnp.float32)                        # (out/2, mid)
    g2_pw = jnp.stack([g2_pw_f[:, :init1], g2_pw_f[:, init1:]], 0).astype(jnp.bfloat16)   # (2, out/2, mid/2)

    g1_bias = jnp.stack([g1b1, g1b2], 0).reshape(2, init1, 1)
    g2_bias = jnp.stack([g2b1, g2b2], 0).reshape(2, init2, 1)

    # ---- 3x3 depthwise: shared (9,1,HW) boundary mask + per-tap (9,C,1) BN-folded weights ----
    pp = np.arange(HW)
    hh = pp // W
    ww = pp % W
    mask_np = np.stack([
        (((hh + dy) >= 0) & ((hh + dy) < H) & ((ww + dx) >= 0) & ((ww + dx) < W)).astype(np.float32)
        for dy in (-1, 0, 1) for dx in (-1, 0, 1)])                    # (9, HW)
    mask = jnp.asarray(mask_np)[:, None, :]                            # (9, 1, HW)

    def dw_cols(dw, scale):  # dw: (C,3,3) -> (9, C, 1) per-tap weight columns, BN scale folded
        wf = scale[None, :] * jnp.asarray(dw, jnp.float32).transpose(1, 2, 0).reshape(9, -1)
        return wf[:, :, None]

    g1_dw = dw_cols(p['g1_dw'], g1s2)   # (9, mid/2, 1)
    g2_dw = dw_cols(p['g2_dw'], g2s2)   # (9, out/2, 1)

    # ---- SqueezeExcite weights: split halves host-side; fold hard_sigmoid (x/6 + 0.5) ----
    se_rw = jnp.asarray(p['se_rw'], jnp.float32)                       # (red, mid)
    se_rw_pk = jnp.stack([se_rw[:, :init1], se_rw[:, init1:]], 0)      # (2, red, mid/2)
    se_rb = jnp.asarray(p['se_rb'], jnp.float32).reshape(-1, 1)        # (red, 1)
    se_ew = jnp.asarray(p['se_ew'], jnp.float32) / 6.0                 # (mid, red)
    se_ew_pk = jnp.stack([se_ew[:init1], se_ew[init1:]], 0)            # (2, mid/2, red)
    se_eb = jnp.asarray(p['se_eb'], jnp.float32) / 6.0 + 0.5
    se_eb_pk = jnp.stack([se_eb[:init1], se_eb[init1:]], 0).reshape(2, init1, 1)

    # ---- input layout: (N, C, HW) — pure reshape of contiguous NCHW, no transpose pass ----
    x_in = jnp.asarray(x_nchw, jnp.float32).reshape(N, Cin, HW)

    inputs = [x_in, mask,
              g1_pw, g1_bias, g1_dw,
              se_rw_pk, se_rb, se_ew_pk, se_eb_pk,
              g2_pw, g2_bias, g2_dw]

    kernel = make_ghost_bottleneck_kernel(H, W, Cin, mid_chs, out_chs)

    def const_spec(arr):
        nd = arr.ndim
        return pl.BlockSpec(arr.shape, lambda n, _nd=nd: (0,) * _nd)

    in_specs = [pl.BlockSpec((1, Cin, HW), lambda n: (n, 0, 0))]
    in_specs += [const_spec(a) for a in inputs[1:]]

    out = pl.pallas_call(
        kernel,
        out_shape=jax.ShapeDtypeStruct((N, out_chs, HW), jnp.float32),
        grid_spec=pltpu.PrefetchScalarGridSpec(
            num_scalar_prefetch=0,
            grid=(N,),
            in_specs=in_specs,
            out_specs=pl.BlockSpec((1, out_chs, HW), lambda n: (n, 0, 0)),
        ),
        compiler_params=pltpu.CompilerParams(
            # Per-step blocks are tens of KiB; 16 MiB leaves huge headroom on every
            # generation (incl. v7x's 64 MiB VMEM) without touching v5e's default.
            vmem_limit_bytes=16 * 1024 * 1024,
            dimension_semantics=("parallel",),
        ),
    )(*inputs)

    return out.reshape(N, out_chs, H, W)


# ----------------------- pure-JAX reference (for verification) -----------------------
def ghost_bottleneck_ref(x, p):
    def conv1x1(v, w):  # w: (Cout, Cin)
        return lax.conv_general_dilated(v, w[:, :, None, None], (1, 1), 'VALID',
                                        dimension_numbers=('NCHW', 'OIHW', 'NCHW'))

    def dwconv(v, w):  # w: (C, 3, 3), depthwise (groups = C)
        C = v.shape[1]
        return lax.conv_general_dilated(v, w[:, None, :, :], (1, 1), ((1, 1), (1, 1)),
                                        dimension_numbers=('NCHW', 'OIHW', 'NCHW'),
                                        feature_group_count=C)

    def bn(v, gamma, beta, mean, var, eps=1e-5):
        s = gamma / jnp.sqrt(var + eps)
        return v * s[None, :, None, None] + (beta - mean * s)[None, :, None, None]

    x1 = jax.nn.relu(bn(conv1x1(x, p['g1_pw']), *p['g1_bn1']))
    x2 = jax.nn.relu(bn(dwconv(x1, p['g1_dw']), *p['g1_bn2']))
    xm = jnp.concatenate([x1, x2], axis=1)[:, :32]

    pooled = jnp.mean(xm, axis=(2, 3), keepdims=True)
    r = jax.nn.relu(conv1x1(pooled, p['se_rw']) + p['se_rb'][None, :, None, None])
    e = conv1x1(r, p['se_ew']) + p['se_eb'][None, :, None, None]
    gate = jnp.clip(e + 3.0, 0.0, 6.0) / 6.0
    xm = xm * gate

    y1 = bn(conv1x1(xm, p['g2_pw']), *p['g2_bn1'])
    y2 = bn(dwconv(y1, p['g2_dw']), *p['g2_bn2'])
    y = jnp.concatenate([y1, y2], axis=1)[:, :16]
    return y + x


if __name__ == "__main__":
    N, CIN, H, W = 4, 16, 16, 16
    MID, OUT, RED = 32, 16, 8   # RED = _make_divisible(32 * 0.25, 4) = 8

    key = jax.random.PRNGKey(0)
    ks = jax.random.split(key, 16)

    def bn_params(k, c):
        k1, k2, k3, k4 = jax.random.split(k, 4)
        gamma = jax.random.uniform(k1, (c,), jnp.float32, 0.5, 1.5)
        beta = 0.1 * jax.random.normal(k2, (c,), jnp.float32)
        mean = 0.1 * jax.random.normal(k3, (c,), jnp.float32)
        var = jax.random.uniform(k4, (c,), jnp.float32, 0.5, 1.5)
        return gamma, beta, mean, var

    params = {
        'g1_pw': 0.2 * jax.random.normal(ks[0], (16, CIN), jnp.float32),   # ghost1 primary 1x1
        'g1_bn1': bn_params(ks[1], 16),
        'g1_dw': 0.2 * jax.random.normal(ks[2], (16, 3, 3), jnp.float32),  # ghost1 cheap dw3x3
        'g1_bn2': bn_params(ks[3], 16),
        'se_rw': 0.2 * jax.random.normal(ks[4], (RED, MID), jnp.float32),
        'se_rb': 0.1 * jax.random.normal(ks[5], (RED,), jnp.float32),
        'se_ew': 0.2 * jax.random.normal(ks[6], (MID, RED), jnp.float32),
        'se_eb': 0.1 * jax.random.normal(ks[7], (MID,), jnp.float32),
        'g2_pw': 0.2 * jax.random.normal(ks[8], (8, MID), jnp.float32),    # ghost2 primary 1x1
        'g2_bn1': bn_params(ks[9], 8),
        'g2_dw': 0.2 * jax.random.normal(ks[10], (8, 3, 3), jnp.float32),  # ghost2 cheap dw3x3
        'g2_bn2': bn_params(ks[11], 8),
    }
    x = jax.random.normal(ks[12], (N, CIN, H, W), jnp.float32)

    out = ghost_bottleneck_pallas(x, params, mid_chs=MID, out_chs=OUT)
    out = jax.block_until_ready(out)

    ref = jax.block_until_ready(ghost_bottleneck_ref(x, params))
    # bf16 MXU operands on the two pointwise convs -> slightly looser tolerance than pure f32
    np.testing.assert_allclose(np.asarray(out), np.asarray(ref), rtol=3e-2, atol=3e-2)

    print("KERNEL_OK")
</pallas_src>

<mosaic_0001>
module attributes {stable_mosaic.version = 11 : i64} {
  func.func @kernel(%arg0: i32, %arg1: memref<1x16x256xf32, #tpu.memory_space<vmem>>, %arg2: memref<9x1x256xf32, #tpu.memory_space<vmem>>, %arg3: memref<16x16xbf16, #tpu.memory_space<vmem>>, %arg4: memref<2x16x1xf32, #tpu.memory_space<vmem>>, %arg5: memref<9x16x1xf32, #tpu.memory_space<vmem>>, %arg6: memref<2x8x16xf32, #tpu.memory_space<vmem>>, %arg7: memref<8x1xf32, #tpu.memory_space<vmem>>, %arg8: memref<2x16x8xf32, #tpu.memory_space<vmem>>, %arg9: memref<2x16x1xf32, #tpu.memory_space<vmem>>, %arg10: memref<2x8x16xbf16, #tpu.memory_space<vmem>>, %arg11: memref<2x8x1xf32, #tpu.memory_space<vmem>>, %arg12: memref<9x8x1xf32, #tpu.memory_space<vmem>>, %arg13: memref<1x16x256xf32, #tpu.memory_space<vmem>>) attributes {dimension_semantics = [#tpu.dimension_semantics<parallel>], iteration_bounds = array<i64: 4>, scalar_prefetch = 0 : i64, scratch_operands = 0 : i64, tpu.core_type = #tpu.core_type<tc>, window_params = [{transform_indices = @transform_0, window_bounds = array<i64: 1, 16, 256>}, {pipeline_mode = #tpu.pipeline_mode<synchronous>, transform_indices = @transform_1, window_bounds = array<i64: 9, 1, 256>}, {pipeline_mode = #tpu.pipeline_mode<synchronous>, transform_indices = @transform_2, window_bounds = array<i64: 16, 16>}, {pipeline_mode = #tpu.pipeline_mode<synchronous>, transform_indices = @transform_3, window_bounds = array<i64: 2, 16, 1>}, {pipeline_mode = #tpu.pipeline_mode<synchronous>, transform_indices = @transform_4, window_bounds = array<i64: 9, 16, 1>}, {pipeline_mode = #tpu.pipeline_mode<synchronous>, transform_indices = @transform_5, window_bounds = array<i64: 2, 8, 16>}, {pipeline_mode = #tpu.pipeline_mode<synchronous>, transform_indices = @transform_6, window_bounds = array<i64: 8, 1>}, {pipeline_mode = #tpu.pipeline_mode<synchronous>, transform_indices = @transform_7, window_bounds = array<i64: 2, 16, 8>}, {pipeline_mode = #tpu.pipeline_mode<synchronous>, transform_indices = @transform_8, window_bounds = array<i64: 2, 16, 1>}, {pipeline_mode = #tpu.pipeline_mode<synchronous>, transform_indices = @transform_9, window_bounds = array<i64: 2, 8, 16>}, {pipeline_mode = #tpu.pipeline_mode<synchronous>, transform_indices = @transform_10, window_bounds = array<i64: 2, 8, 1>}, {pipeline_mode = #tpu.pipeline_mode<synchronous>, transform_indices = @transform_11, window_bounds = array<i64: 9, 8, 1>}, {transform_indices = @transform_12, window_bounds = array<i64: 1, 16, 256>}]} {
    %c0 = arith.constant 0 : index
    %c0_0 = arith.constant 0 : index
    %c0_1 = arith.constant 0 : index
    %0 = vector.load %arg1[%c0, %c0_0, %c0_1] : memref<1x16x256xf32, #tpu.memory_space<vmem>>, vector<1x16x256xf32>
    %1 = vector.shape_cast %0 : vector<1x16x256xf32> to vector<16x256xf32>
    %2 = arith.truncf %1 : vector<16x256xf32> to vector<16x256xbf16>
    %c0_2 = arith.constant 0 : index
    %c0_3 = arith.constant 0 : index
    %3 = vector.load %arg3[%c0_2, %c0_3] : memref<16x16xbf16, #tpu.memory_space<vmem>>, vector<16x16xbf16>
    %cst = arith.constant dense<0.000000e+00> : vector<16x256xf32>
    %4 = tpu.matmul %3, %2, %cst {dimension_numbers = #tpu.dot_dimension_numbers<[1], [0], [0], [1], [0, 0, 1, 1], [], []>} : vector<16x16xbf16>, vector<16x256xbf16>, vector<16x256xf32> -> vector<16x256xf32>
    %c0_4 = arith.constant 0 : index
    %c0_5 = arith.constant 0 : index
    %c0_6 = arith.constant 0 : index
    %5 = vector.load %arg4[%c0_4, %c0_5, %c0_6] : memref<2x16x1xf32, #tpu.memory_space<vmem>>, vector<1x16x1xf32>
    %6 = vector.shape_cast %5 : vector<1x16x1xf32> to vector<16x1xf32>
    %7 = vector.broadcast %6 : vector<16x1xf32> to vector<16x256xf32>
    %8 = arith.addf %4, %7 : vector<16x256xf32>
    %cst_7 = arith.constant 0.000000e+00 : f32
    %9 = vector.broadcast %cst_7 : f32 to vector<16x256xf32>
    %10 = arith.maximumf %8, %9 : vector<16x256xf32>
    %c4 = arith.constant 4 : index
    %c0_8 = arith.constant 0 : index
    %c0_9 = arith.constant 0 : index
    %11 = vector.load %arg5[%c4, %c0_8, %c0_9] : memref<9x16x1xf32, #tpu.memory_space<vmem>>, vector<1x16x1xf32>
    %12 = vector.shape_cast %11 : vector<1x16x1xf32> to vector<16x1xf32>
    %13 = vector.broadcast %12 : vector<16x1xf32> to vector<16x256xf32>
    %14 = arith.mulf %10, %13 : vector<16x256xf32>
    %c17_i32 = arith.constant 17 : i32
    %15 = tpu.dynamic_rotate %10 by %c17_i32 dim 1 : vector<16x256xf32>, i32 -> vector<16x256xf32>
    %c0_10 = arith.constant 0 : index
    %c0_11 = arith.constant 0 : index
    %c0_12 = arith.constant 0 : index
    %16 = vector.load %arg2[%c0_10, %c0_11, %c0_12] : memref<9x1x256xf32, #tpu.memory_space<vmem>>, vector<1x1x256xf32>
    %17 = vector.shape_cast %16 : vector<1x1x256xf32> to vector<1x256xf32>
    %18 = vector.broadcast %17 : vector<1x256xf32> to vector<16x256xf32>
    %19 = arith.mulf %15, %18 : vector<16x256xf32>
    %c0_13 = arith.constant 0 : index
    %c0_14 = arith.constant 0 : index
    %c0_15 = arith.constant 0 : index
    %20 = vector.load %arg5[%c0_13, %c0_14, %c0_15] : memref<9x16x1xf32, #tpu.memory_space<vmem>>, vector<1x16x1xf32>
    %21 = vector.shape_cast %20 : vector<1x16x1xf32> to vector<16x1xf32>
    %22 = vector.broadcast %21 : vector<16x1xf32> to vector<16x256xf32>
    %23 = arith.mulf %19, %22 : vector<16x256xf32>
    %24 = arith.addf %14, %23 : vector<16x256xf32>
    %c16_i32 = arith.constant 16 : i32
    %25 = tpu.dynamic_rotate %10 by %c16_i32 dim 1 : vector<16x256xf32>, i32 -> vector<16x256xf32>
    %c1 = arith.constant 1 : index
    %c0_16 = arith.constant 0 : index
    %c0_17 = arith.constant 0 : index
    %26 = vector.load %arg2[%c1, %c0_16, %c0_17] : memref<9x1x256xf32, #tpu.memory_space<vmem>>, vector<1x1x256xf32>
    %27 = vector.shape_cast %26 : vector<1x1x256xf32> to vector<1x256xf32>
    %28 = vector.broadcast %27 : vector<1x256xf32> to vector<16x256xf32>
    %29 = arith.mulf %25, %28 : vector<16x256xf32>
    %c1_18 = arith.constant 1 : index
    %c0_19 = arith.constant 0 : index
    %c0_20 = arith.constant 0 : index
    %30 = vector.load %arg5[%c1_18, %c0_19, %c0_20] : memref<9x16x1xf32, #tpu.memory_space<vmem>>, vector<1x16x1xf32>
    %31 = vector.shape_cast %30 : vector<1x16x1xf32> to vector<16x1xf32>
    %32 = vector.broadcast %31 : vector<16x1xf32> to vector<16x256xf32>
    %33 = arith.mulf %29, %32 : vector<16x256xf32>
    %34 = arith.addf %24, %33 : vector<16x256xf32>
    %c15_i32 = arith.constant 15 : i32
    %35 = tpu.dynamic_rotate %10 by %c15_i32 dim 1 : vector<16x256xf32>, i32 -> vector<16x256xf32>
    %c2 = arith.constant 2 : index
    %c0_21 = arith.constant 0 : index
    %c0_22 = arith.constant 0 : index
    %36 = vector.load %arg2[%c2, %c0_21, %c0_22] : memref<9x1x256xf32, #tpu.memory_space<vmem>>, vector<1x1x256xf32>
    %37 = vector.shape_cast %36 : vector<1x1x256xf32> to vector<1x256xf32>
    %38 = vector.broadcast %37 : vector<1x256xf32> to vector<16x256xf32>
    %39 = arith.mulf %35, %38 : vector<16x256xf32>
    %c2_23 = arith.constant 2 : index
    %c0_24 = arith.constant 0 : index
    %c0_25 = arith.constant 0 : index
    %40 = vector.load %arg5[%c2_23, %c0_24, %c0_25] : memref<9x16x1xf32, #tpu.memory_space<vmem>>, vector<1x16x1xf32>
    %41 = vector.shape_cast %40 : vector<1x16x1xf32> to vector<16x1xf32>
    %42 = vector.broadcast %41 : vector<16x1xf32> to vector<16x256xf32>
    %43 = arith.mulf %39, %42 : vector<16x256xf32>
    %44 = arith.addf %34, %43 : vector<16x256xf32>
    %c1_i32 = arith.constant 1 : i32
    %45 = tpu.dynamic_rotate %10 by %c1_i32 dim 1 : vector<16x256xf32>, i32 -> vector<16x256xf32>
    %c3 = arith.constant 3 : index
    %c0_26 = arith.constant 0 : index
    %c0_27 = arith.constant 0 : index
    %46 = vector.load %arg2[%c3, %c0_26, %c0_27] : memref<9x1x256xf32, #tpu.memory_space<vmem>>, vector<1x1x256xf32>
    %47 = vector.shape_cast %46 : vector<1x1x256xf32> to vector<1x256xf32>
    %48 = vector.broadcast %47 : vector<1x256xf32> to vector<16x256xf32>
    %49 = arith.mulf %45, %48 : vector<16x256xf32>
    %c3_28 = arith.constant 3 : index
    %c0_29 = arith.constant 0 : index
    %c0_30 = arith.constant 0 : index
    %50 = vector.load %arg5[%c3_28, %c0_29, %c0_30] : memref<9x16x1xf32, #tpu.memory_space<vmem>>, vector<1x16x1xf32>
    %51 = vector.shape_cast %50 : vector<1x16x1xf32> to vector<16x1xf32>
    %52 = vector.broadcast %51 : vector<16x1xf32> to vector<16x256xf32>
    %53 = arith.mulf %49, %52 : vector<16x256xf32>
    %54 = arith.addf %44, %53 : vector<16x256xf32>
    %c255_i32 = arith.constant 255 : i32
    %55 = tpu.dynamic_rotate %10 by %c255_i32 dim 1 : vector<16x256xf32>, i32 -> vector<16x256xf32>
    %c5 = arith.constant 5 : index
    %c0_31 = arith.constant 0 : index
    %c0_32 = arith.constant 0 : index
    %56 = vector.load %arg2[%c5, %c0_31, %c0_32] : memref<9x1x256xf32, #tpu.memory_space<vmem>>, vector<1x1x256xf32>
    %57 = vector.shape_cast %56 : vector<1x1x256xf32> to vector<1x256xf32>
    %58 = vector.broadcast %57 : vector<1x256xf32> to vector<16x256xf32>
    %59 = arith.mulf %55, %58 : vector<16x256xf32>
    %c5_33 = arith.constant 5 : index
    %c0_34 = arith.constant 0 : index
    %c0_35 = arith.constant 0 : index
    %60 = vector.load %arg5[%c5_33, %c0_34, %c0_35] : memref<9x16x1xf32, #tpu.memory_space<vmem>>, vector<1x16x1xf32>
    %61 = vector.shape_cast %60 : vector<1x16x1xf32> to vector<16x1xf32>
    %62 = vector.broadcast %61 : vector<16x1xf32> to vector<16x256xf32>
    %63 = arith.mulf %59, %62 : vector<16x256xf32>
    %64 = arith.addf %54, %63 : vector<16x256xf32>
    %c241_i32 = arith.constant 241 : i32
    %65 = tpu.dynamic_rotate %10 by %c241_i32 dim 1 : vector<16x256xf32>, i32 -> vector<16x256xf32>
    %c6 = arith.constant 6 : index
    %c0_36 = arith.constant 0 : index
    %c0_37 = arith.constant 0 : index
    %66 = vector.load %arg2[%c6, %c0_36, %c0_37] : memref<9x1x256xf32, #tpu.memory_space<vmem>>, vector<1x1x256xf32>
    %67 = vector.shape_cast %66 : vector<1x1x256xf32> to vector<1x256xf32>
    %68 = vector.broadcast %67 : vector<1x256xf32> to vector<16x256xf32>
    %69 = arith.mulf %65, %68 : vector<16x256xf32>
    %c6_38 = arith.constant 6 : index
    %c0_39 = arith.constant 0 : index
    %c0_40 = arith.constant 0 : index
    %70 = vector.load %arg5[%c6_38, %c0_39, %c0_40] : memref<9x16x1xf32, #tpu.memory_space<vmem>>, vector<1x16x1xf32>
    %71 = vector.shape_cast %70 : vector<1x16x1xf32> to vector<16x1xf32>
    %72 = vector.broadcast %71 : vector<16x1xf32> to vector<16x256xf32>
    %73 = arith.mulf %69, %72 : vector<16x256xf32>
    %74 = arith.addf %64, %73 : vector<16x256xf32>
    %c240_i32 = arith.constant 240 : i32
    %75 = tpu.dynamic_rotate %10 by %c240_i32 dim 1 : vector<16x256xf32>, i32 -> vector<16x256xf32>
    %c7 = arith.constant 7 : index
    %c0_41 = arith.constant 0 : index
    %c0_42 = arith.constant 0 : index
    %76 = vector.load %arg2[%c7, %c0_41, %c0_42] : memref<9x1x256xf32, #tpu.memory_space<vmem>>, vector<1x1x256xf32>
    %77 = vector.shape_cast %76 : vector<1x1x256xf32> to vector<1x256xf32>
    %78 = vector.broadcast %77 : vector<1x256xf32> to vector<16x256xf32>
    %79 = arith.mulf %75, %78 : vector<16x256xf32>
    %c7_43 = arith.constant 7 : index
    %c0_44 = arith.constant 0 : index
    %c0_45 = arith.constant 0 : index
    %80 = vector.load %arg5[%c7_43, %c0_44, %c0_45] : memref<9x16x1xf32, #tpu.memory_space<vmem>>, vector<1x16x1xf32>
    %81 = vector.shape_cast %80 : vector<1x16x1xf32> to vector<16x1xf32>
    %82 = vector.broadcast %81 : vector<16x1xf32> to vector<16x256xf32>
    %83 = arith.mulf %79, %82 : vector<16x256xf32>
    %84 = arith.addf %74, %83 : vector<16x256xf32>
    %c239_i32 = arith.constant 239 : i32
    %85 = tpu.dynamic_rotate %10 by %c239_i32 dim 1 : vector<16x256xf32>, i32 -> vector<16x256xf32>
    %c8 = arith.constant 8 : index
    %c0_46 = arith.constant 0 : index
    %c0_47 = arith.constant 0 : index
    %86 = vector.load %arg2[%c8, %c0_46, %c0_47] : memref<9x1x256xf32, #tpu.memory_space<vmem>>, vector<1x1x256xf32>
    %87 = vector.shape_cast %86 : vector<1x1x256xf32> to vector<1x256xf32>
    %88 = vector.broadcast %87 : vector<1x256xf32> to vector<16x256xf32>
    %89 = arith.mulf %85, %88 : vector<16x256xf32>
    %c8_48 = arith.constant 8 : index
    %c0_49 = arith.constant 0 : index
    %c0_50 = arith.constant 0 : index
    %90 = vector.load %arg5[%c8_48, %c0_49, %c0_50] : memref<9x16x1xf32, #tpu.memory_space<vmem>>, vector<1x16x1xf32>
    %91 = vector.shape_cast %90 : vector<1x16x1xf32> to vector<16x1xf32>
    %92 = vector.broadcast %91 : vector<16x1xf32> to vector<16x256xf32>
    %93 = arith.mulf %89, %92 : vector<16x256xf32>
    %94 = arith.addf %84, %93 : vector<16x256xf32>
    %c1_51 = arith.constant 1 : index
    %c0_52 = arith.constant 0 : index
    %c0_53 = arith.constant 0 : index
    %95 = vector.load %arg4[%c1_51, %c0_52, %c0_53] : memref<2x16x1xf32, #tpu.memory_space<vmem>>, vector<1x16x1xf32>
    %96 = vector.shape_cast %95 : vector<1x16x1xf32> to vector<16x1xf32>
    %97 = vector.broadcast %96 : vector<16x1xf32> to vector<16x256xf32>
    %98 = arith.addf %94, %97 : vector<16x256xf32>
    %cst_54 = arith.constant 0.000000e+00 : f32
    %99 = vector.broadcast %cst_54 : f32 to vector<16x256xf32>
    %100 = arith.maximumf %98, %99 : vector<16x256xf32>
    %cst_55 = arith.constant dense<0.000000e+00> : vector<16xf32>
    %101 = vector.multi_reduction <add>, %10, %cst_55 [1] : vector<16x256xf32> to vector<16xf32>
    %102 = vector.shape_cast %101 : vector<16xf32> to vector<16x1xf32>
    %cst_56 = arith.constant 3.906250e-03 : f32
    %103 = vector.broadcast %cst_56 : f32 to vector<16x1xf32>
    %104 = arith.mulf %102, %103 : vector<16x1xf32>
    %cst_57 = arith.constant dense<0.000000e+00> : vector<16xf32>
    %105 = vector.multi_reduction <add>, %100, %cst_57 [1] : vector<16x256xf32> to vector<16xf32>
    %106 = vector.shape_cast %105 : vector<16xf32> to vector<16x1xf32>
    %cst_58 = arith.constant 3.906250e-03 : f32
    %107 = vector.broadcast %cst_58 : f32 to vector<16x1xf32>
    %108 = arith.mulf %106, %107 : vector<16x1xf32>
    %c0_59 = arith.constant 0 : index
    %c0_60 = arith.constant 0 : index
    %c0_61 = arith.constant 0 : index
    %109 = vector.load %arg6[%c0_59, %c0_60, %c0_61] : memref<2x8x16xf32, #tpu.memory_space<vmem>>, vector<1x8x16xf32>
    %110 = vector.shape_cast %109 : vector<1x8x16xf32> to vector<8x16xf32>
    %cst_62 = arith.constant dense<0.000000e+00> : vector<8x1xf32>
    %111 = tpu.matmul %110, %104, %cst_62 {dimension_numbers = #tpu.dot_dimension_numbers<[1], [0], [0], [1], [0, 0, 1, 1], [], []>} : vector<8x16xf32>, vector<16x1xf32>, vector<8x1xf32> -> vector<8x1xf32>
    %c1_63 = arith.constant 1 : index
    %c0_64 = arith.constant 0 : index
    %c0_65 = arith.constant 0 : index
    %112 = vector.load %arg6[%c1_63, %c0_64, %c0_65] : memref<2x8x16xf32, #tpu.memory_space<vmem>>, vector<1x8x16xf32>
    %113 = vector.shape_cast %112 : vector<1x8x16xf32> to vector<8x16xf32>
    %cst_66 = arith.constant dense<0.000000e+00> : vector<8x1xf32>
    %114 = tpu.matmul %113, %108, %cst_66 {dimension_numbers = #tpu.dot_dimension_numbers<[1], [0], [0], [1], [0, 0, 1, 1], [], []>} : vector<8x16xf32>, vector<16x1xf32>, vector<8x1xf32> -> vector<8x1xf32>
    %115 = arith.addf %111, %114 : vector<8x1xf32>
    %c0_67 = arith.constant 0 : index
    %c0_68 = arith.constant 0 : index
    %116 = vector.load %arg7[%c0_67, %c0_68] : memref<8x1xf32, #tpu.memory_space<vmem>>, vector<8x1xf32>
    %117 = arith.addf %115, %116 : vector<8x1xf32>
    %cst_69 = arith.constant 0.000000e+00 : f32
    %118 = vector.broadcast %cst_69 : f32 to vector<8x1xf32>
    %119 = arith.maximumf %117, %118 : vector<8x1xf32>
    %c0_70 = arith.constant 0 : index
    %c0_71 = arith.constant 0 : index
    %c0_72 = arith.constant 0 : index
    %120 = vector.load %arg8[%c0_70, %c0_71, %c0_72] : memref<2x16x8xf32, #tpu.memory_space<vmem>>, vector<1x16x8xf32>
    %121 = vector.shape_cast %120 : vector<1x16x8xf32> to vector<16x8xf32>
    %cst_73 = arith.constant dense<0.000000e+00> : vector<16x1xf32>
    %122 = tpu.matmul %121, %119, %cst_73 {dimension_numbers = #tpu.dot_dimension_numbers<[1], [0], [0], [1], [0, 0, 1, 1], [], []>} : vector<16x8xf32>, vector<8x1xf32>, vector<16x1xf32> -> vector<16x1xf32>
    %c0_74 = arith.constant 0 : index
    %c0_75 = arith.constant 0 : index
    %c0_76 = arith.constant 0 : index
    %123 = vector.load %arg9[%c0_74, %c0_75, %c0_76] : memref<2x16x1xf32, #tpu.memory_space<vmem>>, vector<1x16x1xf32>
    %124 = vector.shape_cast %123 : vector<1x16x1xf32> to vector<16x1xf32>
    %125 = arith.addf %122, %124 : vector<16x1xf32>
    %cst_77 = arith.constant 0.000000e+00 : f32
    %cst_78 = arith.constant 1.000000e+00 : f32
    %126 = vector.broadcast %cst_77 : f32 to vector<16x1xf32>
    %127 = arith.maximumf %126, %125 : vector<16x1xf32>
    %128 = vector.broadcast %cst_78 : f32 to vector<16x1xf32>
    %129 = arith.minimumf %128, %127 : vector<16x1xf32>
    %c1_79 = arith.constant 1 : index
    %c0_80 = arith.constant 0 : index
    %c0_81 = arith.constant 0 : index
    %130 = vector.load %arg8[%c1_79, %c0_80, %c0_81] : memref<2x16x8xf32, #tpu.memory_space<vmem>>, vector<1x16x8xf32>
    %131 = vector.shape_cast %130 : vector<1x16x8xf32> to vector<16x8xf32>
    %cst_82 = arith.constant dense<0.000000e+00> : vector<16x1xf32>
    %132 = tpu.matmul %131, %119, %cst_82 {dimension_numbers = #tpu.dot_dimension_numbers<[1], [0], [0], [1], [0, 0, 1, 1], [], []>} : vector<16x8xf32>, vector<8x1xf32>, vector<16x1xf32> -> vector<16x1xf32>
    %c1_83 = arith.constant 1 : index
    %c0_84 = arith.constant 0 : index
    %c0_85 = arith.constant 0 : index
    %133 = vector.load %arg9[%c1_83, %c0_84, %c0_85] : memref<2x16x1xf32, #tpu.memory_space<vmem>>, vector<1x16x1xf32>
    %134 = vector.shape_cast %133 : vector<1x16x1xf32> to vector<16x1xf32>
    %135 = arith.addf %132, %134 : vector<16x1xf32>
    %cst_86 = arith.constant 0.000000e+00 : f32
    %cst_87 = arith.constant 1.000000e+00 : f32
    %136 = vector.broadcast %cst_86 : f32 to vector<16x1xf32>
    %137 = arith.maximumf %136, %135 : vector<16x1xf32>
    %138 = vector.broadcast %cst_87 : f32 to vector<16x1xf32>
    %139 = arith.minimumf %138, %137 : vector<16x1xf32>
    %140 = vector.broadcast %129 : vector<16x1xf32> to vector<16x256xf32>
    %141 = arith.mulf %10, %140 : vector<16x256xf32>
    %142 = vector.broadcast %139 : vector<16x1xf32> to vector<16x256xf32>
    %143 = arith.mulf %100, %142 : vector<16x256xf32>
    %c0_88 = arith.constant 0 : index
    %c0_89 = arith.constant 0 : index
    %c0_90 = arith.constant 0 : index
    %144 = vector.load %arg10[%c0_88, %c0_89, %c0_90] : memref<2x8x16xbf16, #tpu.memory_space<vmem>>, vector<1x8x16xbf16>
    %145 = vector.shape_cast %144 : vector<1x8x16xbf16> to vector<8x16xbf16>
    %146 = arith.truncf %141 : vector<16x256xf32> to vector<16x256xbf16>
    %cst_91 = arith.constant dense<0.000000e+00> : vector<8x256xf32>
    %147 = tpu.matmul %145, %146, %cst_91 {dimension_numbers = #tpu.dot_dimension_numbers<[1], [0], [0], [1], [0, 0, 1, 1], [], []>} : vector<8x16xbf16>, vector<16x256xbf16>, vector<8x256xf32> -> vector<8x256xf32>
    %c1_92 = arith.constant 1 : index
    %c0_93 = arith.constant 0 : index
    %c0_94 = arith.constant 0 : index
    %148 = vector.load %arg10[%c1_92, %c0_93, %c0_94] : memref<2x8x16xbf16, #tpu.memory_space<vmem>>, vector<1x8x16xbf16>
    %149 = vector.shape_cast %148 : vector<1x8x16xbf16> to vector<8x16xbf16>
    %150 = arith.truncf %143 : vector<16x256xf32> to vector<16x256xbf16>
    %cst_95 = arith.constant dense<0.000000e+00> : vector<8x256xf32>
    %151 = tpu.matmul %149, %150, %cst_95 {dimension_numbers = #tpu.dot_dimension_numbers<[1], [0], [0], [1], [0, 0, 1, 1], [], []>} : vector<8x16xbf16>, vector<16x256xbf16>, vector<8x256xf32> -> vector<8x256xf32>
    %152 = arith.addf %147, %151 : vector<8x256xf32>
    %c0_96 = arith.constant 0 : index
    %c0_97 = arith.constant 0 : index
    %c0_98 = arith.constant 0 : index
    %153 = vector.load %arg11[%c0_96, %c0_97, %c0_98] : memref<2x8x1xf32, #tpu.memory_space<vmem>>, vector<1x8x1xf32>
    %154 = vector.shape_cast %153 : vector<1x8x1xf32> to vector<8x1xf32>
    %155 = vector.broadcast %154 : vector<8x1xf32> to vector<8x256xf32>
    %156 = arith.addf %152, %155 : vector<8x256xf32>
    %c4_99 = arith.constant 4 : index
    %c0_100 = arith.constant 0 : index
    %c0_101 = arith.constant 0 : index
    %157 = vector.load %arg12[%c4_99, %c0_100, %c0_101] : memref<9x8x1xf32, #tpu.memory_space<vmem>>, vector<1x8x1xf32>
    %158 = vector.shape_cast %157 : vector<1x8x1xf32> to vector<8x1xf32>
    %159 = vector.broadcast %158 : vector<8x1xf32> to vector<8x256xf32>
    %160 = arith.mulf %156, %159 : vector<8x256xf32>
    %c17_i32_102 = arith.constant 17 : i32
    %161 = tpu.dynamic_rotate %156 by %c17_i32_102 dim 1 : vector<8x256xf32>, i32 -> vector<8x256xf32>
    %c0_103 = arith.constant 0 : index
    %c0_104 = arith.constant 0 : index
    %c0_105 = arith.constant 0 : index
    %162 = vector.load %arg2[%c0_103, %c0_104, %c0_105] : memref<9x1x256xf32, #tpu.memory_space<vmem>>, vector<1x1x256xf32>
    %163 = vector.shape_cast %162 : vector<1x1x256xf32> to vector<1x256xf32>
    %164 = vector.broadcast %163 : vector<1x256xf32> to vector<8x256xf32>
    %165 = arith.mulf %161, %164 : vector<8x256xf32>
    %c0_106 = arith.constant 0 : index
    %c0_107 = arith.constant 0 : index
    %c0_108 = arith.constant 0 : index
    %166 = vector.load %arg12[%c0_106, %c0_107, %c0_108] : memref<9x8x1xf32, #tpu.memory_space<vmem>>, vector<1x8x1xf32>
    %167 = vector.shape_cast %166 : vector<1x8x1xf32> to vector<8x1xf32>
    %168 = vector.broadcast %167 : vector<8x1xf32> to vector<8x256xf32>
    %169 = arith.mulf %165, %168 : vector<8x256xf32>
    %170 = arith.addf %160, %169 : vector<8x256xf32>
    %c16_i32_109 = arith.constant 16 : i32
    %171 = tpu.dynamic_rotate %156 by %c16_i32_109 dim 1 : vector<8x256xf32>, i32 -> vector<8x256xf32>
    %c1_110 = arith.constant 1 : index
    %c0_111 = arith.constant 0 : index
    %c0_112 = arith.constant 0 : index
    %172 = vector.load %arg2[%c1_110, %c0_111, %c0_112] : memref<9x1x256xf32, #tpu.memory_space<vmem>>, vector<1x1x256xf32>
    %173 = vector.shape_cast %172 : vector<1x1x256xf32> to vector<1x256xf32>
    %174 = vector.broadcast %173 : vector<1x256xf32> to vector<8x256xf32>
    %175 = arith.mulf %171, %174 : vector<8x256xf32>
    %c1_113 = arith.constant 1 : index
    %c0_114 = arith.constant 0 : index
    %c0_115 = arith.constant 0 : index
    %176 = vector.load %arg12[%c1_113, %c0_114, %c0_115] : memref<9x8x1xf32, #tpu.memory_space<vmem>>, vector<1x8x1xf32>
    %177 = vector.shape_cast %176 : vector<1x8x1xf32> to vector<8x1xf32>
    %178 = vector.broadcast %177 : vector<8x1xf32> to vector<8x256xf32>
    %179 = arith.mulf %175, %178 : vector<8x256xf32>
    %180 = arith.addf %170, %179 : vector<8x256xf32>
    %c15_i32_116 = arith.constant 15 : i32
    %181 = tpu.dynamic_rotate %156 by %c15_i32_116 dim 1 : vector<8x256xf32>, i32 -> vector<8x256xf32>
    %c2_117 = arith.constant 2 : index
    %c0_118 = arith.constant 0 : index
    %c0_119 = arith.constant 0 : index
    %182 = vector.load %arg2[%c2_117, %c0_118, %c0_119] : memref<9x1x256xf32, #tpu.memory_space<vmem>>, vector<1x1x256xf32>
    %183 = vector.shape_cast %182 : vector<1x1x256xf32> to vector<1x256xf32>
    %184 = vector.broadcast %183 : vector<1x256xf32> to vector<8x256xf32>
    %185 = arith.mulf %181, %184 : vector<8x256xf32>
    %c2_120 = arith.constant 2 : index
    %c0_121 = arith.constant 0 : index
    %c0_122 = arith.constant 0 : index
    %186 = vector.load %arg12[%c2_120, %c0_121, %c0_122] : memref<9x8x1xf32, #tpu.memory_space<vmem>>, vector<1x8x1xf32>
    %187 = vector.shape_cast %186 : vector<1x8x1xf32> to vector<8x1xf32>
    %188 = vector.broadcast %187 : vector<8x1xf32> to vector<8x256xf32>
    %189 = arith.mulf %185, %188 : vector<8x256xf32>
    %190 = arith.addf %180, %189 : vector<8x256xf32>
    %c1_i32_123 = arith.constant 1 : i32
    %191 = tpu.dynamic_rotate %156 by %c1_i32_123 dim 1 : vector<8x256xf32>, i32 -> vector<8x256xf32>
    %c3_124 = arith.constant 3 : index
    %c0_125 = arith.constant 0 : index
    %c0_126 = arith.constant 0 : index
    %192 = vector.load %arg2[%c3_124, %c0_125, %c0_126] : memref<9x1x256xf32, #tpu.memory_space<vmem>>, vector<1x1x256xf32>
    %193 = vector.shape_cast %192 : vector<1x1x256xf32> to vector<1x256xf32>
    %194 = vector.broadcast %193 : vector<1x256xf32> to vector<8x256xf32>
    %195 = arith.mulf %191, %194 : vector<8x256xf32>
    %c3_127 = arith.constant 3 : index
    %c0_128 = arith.constant 0 : index
    %c0_129 = arith.constant 0 : index
    %196 = vector.load %arg12[%c3_127, %c0_128, %c0_129] : memref<9x8x1xf32, #tpu.memory_space<vmem>>, vector<1x8x1xf32>
    %197 = vector.shape_cast %196 : vector<1x8x1xf32> to vector<8x1xf32>
    %198 = vector.broadcast %197 : vector<8x1xf32> to vector<8x256xf32>
    %199 = arith.mulf %195, %198 : vector<8x256xf32>
    %200 = arith.addf %190, %199 : vector<8x256xf32>
    %c255_i32_130 = arith.constant 255 : i32
    %201 = tpu.dynamic_rotate %156 by %c255_i32_130 dim 1 : vector<8x256xf32>, i32 -> vector<8x256xf32>
    %c5_131 = arith.constant 5 : index
    %c0_132 = arith.constant 0 : index
    %c0_133 = arith.constant 0 : index
    %202 = vector.load %arg2[%c5_131, %c0_132, %c0_133] : memref<9x1x256xf32, #tpu.memory_space<vmem>>, vector<1x1x256xf32>
    %203 = vector.shape_cast %202 : vector<1x1x256xf32> to vector<1x256xf32>
    %204 = vector.broadcast %203 : vector<1x256xf32> to vector<8x256xf32>
    %205 = arith.mulf %201, %204 : vector<8x256xf32>
    %c5_134 = arith.constant 5 : index
    %c0_135 = arith.constant 0 : index
    %c0_136 = arith.constant 0 : index
    %206 = vector.load %arg12[%c5_134, %c0_135, %c0_136] : memref<9x8x1xf32, #tpu.memory_space<vmem>>, vector<1x8x1xf32>
    %207 = vector.shape_cast %206 : vector<1x8x1xf32> to vector<8x1xf32>
    %208 = vector.broadcast %207 : vector<8x1xf32> to vector<8x256xf32>
    %209 = arith.mulf %205, %208 : vector<8x256xf32>
    %210 = arith.addf %200, %209 : vector<8x256xf32>
    %c241_i32_137 = arith.constant 241 : i32
    %211 = tpu.dynamic_rotate %156 by %c241_i32_137 dim 1 : vector<8x256xf32>, i32 -> vector<8x256xf32>
    %c6_138 = arith.constant 6 : index
    %c0_139 = arith.constant 0 : index
    %c0_140 = arith.constant 0 : index
    %212 = vector.load %arg2[%c6_138, %c0_139, %c0_140] : memref<9x1x256xf32, #tpu.memory_space<vmem>>, vector<1x1x256xf32>
    %213 = vector.shape_cast %212 : vector<1x1x256xf32> to vector<1x256xf32>
    %214 = vector.broadcast %213 : vector<1x256xf32> to vector<8x256xf32>
    %215 = arith.mulf %211, %214 : vector<8x256xf32>
    %c6_141 = arith.constant 6 : index
    %c0_142 = arith.constant 0 : index
    %c0_143 = arith.constant 0 : index
    %216 = vector.load %arg12[%c6_141, %c0_142, %c0_143] : memref<9x8x1xf32, #tpu.memory_space<vmem>>, vector<1x8x1xf32>
    %217 = vector.shape_cast %216 : vector<1x8x1xf32> to vector<8x1xf32>
    %218 = vector.broadcast %217 : vector<8x1xf32> to vector<8x256xf32>
    %219 = arith.mulf %215, %218 : vector<8x256xf32>
    %220 = arith.addf %210, %219 : vector<8x256xf32>
    %c240_i32_144 = arith.constant 240 : i32
    %221 = tpu.dynamic_rotate %156 by %c240_i32_144 dim 1 : vector<8x256xf32>, i32 -> vector<8x256xf32>
    %c7_145 = arith.constant 7 : index
    %c0_146 = arith.constant 0 : index
    %c0_147 = arith.constant 0 : index
    %222 = vector.load %arg2[%c7_145, %c0_146, %c0_147] : memref<9x1x256xf32, #tpu.memory_space<vmem>>, vector<1x1x256xf32>
    %223 = vector.shape_cast %222 : vector<1x1x256xf32> to vector<1x256xf32>
    %224 = vector.broadcast %223 : vector<1x256xf32> to vector<8x256xf32>
    %225 = arith.mulf %221, %224 : vector<8x256xf32>
    %c7_148 = arith.constant 7 : index
    %c0_149 = arith.constant 0 : index
    %c0_150 = arith.constant 0 : index
    %226 = vector.load %arg12[%c7_148, %c0_149, %c0_150] : memref<9x8x1xf32, #tpu.memory_space<vmem>>, vector<1x8x1xf32>
    %227 = vector.shape_cast %226 : vector<1x8x1xf32> to vector<8x1xf32>
    %228 = vector.broadcast %227 : vector<8x1xf32> to vector<8x256xf32>
    %229 = arith.mulf %225, %228 : vector<8x256xf32>
    %230 = arith.addf %220, %229 : vector<8x256xf32>
    %c239_i32_151 = arith.constant 239 : i32
    %231 = tpu.dynamic_rotate %156 by %c239_i32_151 dim 1 : vector<8x256xf32>, i32 -> vector<8x256xf32>
    %c8_152 = arith.constant 8 : index
    %c0_153 = arith.constant 0 : index
    %c0_154 = arith.constant 0 : index
    %232 = vector.load %arg2[%c8_152, %c0_153, %c0_154] : memref<9x1x256xf32, #tpu.memory_space<vmem>>, vector<1x1x256xf32>
    %233 = vector.shape_cast %232 : vector<1x1x256xf32> to vector<1x256xf32>
    %234 = vector.broadcast %233 : vector<1x256xf32> to vector<8x256xf32>
    %235 = arith.mulf %231, %234 : vector<8x256xf32>
    %c8_155 = arith.constant 8 : index
    %c0_156 = arith.constant 0 : index
    %c0_157 = arith.constant 0 : index
    %236 = vector.load %arg12[%c8_155, %c0_156, %c0_157] : memref<9x8x1xf32, #tpu.memory_space<vmem>>, vector<1x8x1xf32>
    %237 = vector.shape_cast %236 : vector<1x8x1xf32> to vector<8x1xf32>
    %238 = vector.broadcast %237 : vector<8x1xf32> to vector<8x256xf32>
    %239 = arith.mulf %235, %238 : vector<8x256xf32>
    %240 = arith.addf %230, %239 : vector<8x256xf32>
    %c1_158 = arith.constant 1 : index
    %c0_159 = arith.constant 0 : index
    %c0_160 = arith.constant 0 : index
    %241 = vector.load %arg11[%c1_158, %c0_159, %c0_160] : memref<2x8x1xf32, #tpu.memory_space<vmem>>, vector<1x8x1xf32>
    %242 = vector.shape_cast %241 : vector<1x8x1xf32> to vector<8x1xf32>
    %243 = vector.broadcast %242 : vector<8x1xf32> to vector<8x256xf32>
    %244 = arith.addf %240, %243 : vector<8x256xf32>
    %245 = vector.extract_strided_slice %1 {offsets = [0, 0], sizes = [8, 256], strides = [1, 1]} : vector<16x256xf32> to vector<8x256xf32>
    %246 = arith.addf %156, %245 : vector<8x256xf32>
    %c0_161 = arith.constant 0 : index
    %c0_162 = arith.constant 0 : index
    %c0_163 = arith.constant 0 : index
    %247 = vector.load %arg13[%c0_161, %c0_162, %c0_163] : memref<1x16x256xf32, #tpu.memory_space<vmem>>, vector<1x8x256xf32>
    %248 = vector.shape_cast %247 : vector<1x8x256xf32> to vector<8x256xf32>
    %249 = vector.shape_cast %246 : vector<8x256xf32> to vector<1x8x256xf32>
    tpu.vector_store %arg13[%c0_161, %c0_162, %c0_163], %249 {strides = array<i32>} : memref<1x16x256xf32, #tpu.memory_space<vmem>>, vector<1x8x256xf32>,
    %250 = vector.extract_strided_slice %1 {offsets = [8, 0], sizes = [8, 256], strides = [1, 1]} : vector<16x256xf32> to vector<8x256xf32>
    %251 = arith.addf %244, %250 : vector<8x256xf32>
    %c0_164 = arith.constant 0 : index
    %c8_165 = arith.constant 8 : index
    %c0_166 = arith.constant 0 : index
    %252 = vector.load %arg13[%c0_164, %c8_165, %c0_166] : memref<1x16x256xf32, #tpu.memory_space<vmem>>, vector<1x8x256xf32>
    %253 = vector.shape_cast %252 : vector<1x8x256xf32> to vector<8x256xf32>
    %254 = vector.shape_cast %251 : vector<8x256xf32> to vector<1x8x256xf32>
    tpu.vector_store %arg13[%c0_164, %c8_165, %c0_166], %254 {strides = array<i32>} : memref<1x16x256xf32, #tpu.memory_space<vmem>>, vector<1x8x256xf32>,
    return
  }
  func.func @transform_0(%arg0: i32) -> (i32, i32, i32) {
    %c0_i32 = arith.constant 0 : i32
    %c0_i32_0 = arith.constant 0 : i32
    %c0_i32_1 = arith.constant 0 : i32
    return %arg0, %c0_i32, %c0_i32_0 : i32, i32, i32
  }
  func.func @transform_1(%arg0: i32) -> (i32, i32, i32) {
    %c0_i32 = arith.constant 0 : i32
    %c0_i32_0 = arith.constant 0 : i32
    %c0_i32_1 = arith.constant 0 : i32
    %c0_i32_2 = arith.constant 0 : i32
    return %c0_i32, %c0_i32_0, %c0_i32_1 : i32, i32, i32
  }
  func.func @transform_2(%arg0: i32) -> (i32, i32) {
    %c0_i32 = arith.constant 0 : i32
    %c0_i32_0 = arith.constant 0 : i32
    %c0_i32_1 = arith.constant 0 : i32
    return %c0_i32, %c0_i32_0 : i32, i32
  }
  func.func @transform_3(%arg0: i32) -> (i32, i32, i32) {
    %c0_i32 = arith.constant 0 : i32
    %c0_i32_0 = arith.constant 0 : i32
    %c0_i32_1 = arith.constant 0 : i32
    %c0_i32_2 = arith.constant 0 : i32
    return %c0_i32, %c0_i32_0, %c0_i32_1 : i32, i32, i32
  }
  func.func @transform_4(%arg0: i32) -> (i32, i32, i32) {
    %c0_i32 = arith.constant 0 : i32
    %c0_i32_0 = arith.constant 0 : i32
    %c0_i32_1 = arith.constant 0 : i32
    %c0_i32_2 = arith.constant 0 : i32
    return %c0_i32, %c0_i32_0, %c0_i32_1 : i32, i32, i32
  }
  func.func @transform_5(%arg0: i32) -> (i32, i32, i32) {
    %c0_i32 = arith.constant 0 : i32
    %c0_i32_0 = arith.constant 0 : i32
    %c0_i32_1 = arith.constant 0 : i32
    %c0_i32_2 = arith.constant 0 : i32
    return %c0_i32, %c0_i32_0, %c0_i32_1 : i32, i32, i32
  }
  func.func @transform_6(%arg0: i32) -> (i32, i32) {
    %c0_i32 = arith.constant 0 : i32
    %c0_i32_0 = arith.constant 0 : i32
    %c0_i32_1 = arith.constant 0 : i32
    return %c0_i32, %c0_i32_0 : i32, i32
  }
  func.func @transform_7(%arg0: i32) -> (i32, i32, i32) {
    %c0_i32 = arith.constant 0 : i32
    %c0_i32_0 = arith.constant 0 : i32
    %c0_i32_1 = arith.constant 0 : i32
    %c0_i32_2 = arith.constant 0 : i32
    return %c0_i32, %c0_i32_0, %c0_i32_1 : i32, i32, i32
  }
  func.func @transform_8(%arg0: i32) -> (i32, i32, i32) {
    %c0_i32 = arith.constant 0 : i32
    %c0_i32_0 = arith.constant 0 : i32
    %c0_i32_1 = arith.constant 0 : i32
    %c0_i32_2 = arith.constant 0 : i32
    return %c0_i32, %c0_i32_0, %c0_i32_1 : i32, i32, i32
  }
  func.func @transform_9(%arg0: i32) -> (i32, i32, i32) {
    %c0_i32 = arith.constant 0 : i32
    %c0_i32_0 = arith.constant 0 : i32
    %c0_i32_1 = arith.constant 0 : i32
    %c0_i32_2 = arith.constant 0 : i32
    return %c0_i32, %c0_i32_0, %c0_i32_1 : i32, i32, i32
  }
  func.func @transform_10(%arg0: i32) -> (i32, i32, i32) {
    %c0_i32 = arith.constant 0 : i32
    %c0_i32_0 = arith.constant 0 : i32
    %c0_i32_1 = arith.constant 0 : i32
    %c0_i32_2 = arith.constant 0 : i32
    return %c0_i32, %c0_i32_0, %c0_i32_1 : i32, i32, i32
  }
  func.func @transform_11(%arg0: i32) -> (i32, i32, i32) {
    %c0_i32 = arith.constant 0 : i32
    %c0_i32_0 = arith.constant 0 : i32
    %c0_i32_1 = arith.constant 0 : i32
    %c0_i32_2 = arith.constant 0 : i32
    return %c0_i32, %c0_i32_0, %c0_i32_1 : i32, i32, i32
  }
  func.func @transform_12(%arg0: i32) -> (i32, i32, i32) {
    %c0_i32 = arith.constant 0 : i32
    %c0_i32_0 = arith.constant 0 : i32
    %c0_i32_1 = arith.constant 0 : i32
    return %arg0, %c0_i32, %c0_i32_0 : i32, i32, i32
  }
}

</mosaic_0001>

<llo_original>
// kernel: tpu_custom_call.1
$region0: #{tpu_custom_call.1}
  #allocation0 [shape = 'u32[]', space=smem, size = 0x4, offset = 0x4, fixed_abs, tag = 'smem constant byte address 0x4 - core index']
  #allocation1 [shape = 'u32[72,128]{1,0:T(1,128)}', space=vmem, size = 0x9000, scoped, tag = 'internal scratch']
  %s0 = inlined_call_operand.vmem [shape: f32[4,16,256], index: 0, kind: input, shape index: {}]
  %s1 = inlined_call_operand.vmem [shape: f32[9,1,256], index: 1, kind: input, shape index: {}]
  %s2 = inlined_call_operand.vmem [shape: bf16[16,16], index: 2, kind: input, shape index: {}]
  %s3 = inlined_call_operand.vmem [shape: f32[2,16,1], index: 3, kind: input, shape index: {}]
  %s4 = inlined_call_operand.vmem [shape: f32[9,16,1], index: 4, kind: input, shape index: {}]
  %s5 = inlined_call_operand.vmem [shape: f32[2,8,16], index: 5, kind: input, shape index: {}]
  %s6 = inlined_call_operand.vmem [shape: f32[8,1], index: 6, kind: input, shape index: {}]
  %s7 = inlined_call_operand.vmem [shape: f32[2,16,8], index: 7, kind: input, shape index: {}]
  %s8 = inlined_call_operand.vmem [shape: f32[2,16,1], index: 8, kind: input, shape index: {}]
  %s9 = inlined_call_operand.vmem [shape: bf16[2,8,16], index: 9, kind: input, shape index: {}]
  %s10 = inlined_call_operand.vmem [shape: f32[2,8,1], index: 10, kind: input, shape index: {}]
  %s11 = inlined_call_operand.vmem [shape: f32[9,8,1], index: 11, kind: input, shape index: {}]
  %s12 = inlined_call_operand.hbm [shape: f32[4,16,256], index: 12, kind: output, shape index: {}]
  %s13 = sld [smem:[#allocation0]]
  $region81: #{tpu_custom_call.1} parent=0
    _
  %s15 = ssub.s32 1, %s13
  %s16 = scalar_select 0, %s15, %s13
  $region1: #{tpu_custom_call.1} parent=0
    #allocation2 [shape = 'u8[32768]{0}', space=vmem, size = 0x8000, scoped, tag = 'output window, operand 0']
    #allocation3 [shape = 's32[2]{0}', space=sflag, size = 0x8, scoped, tag = 'scoped memory for tpu_custom_call.1']
    %17 = vsyncpa [#allocation3], 0
    %s18 = scalar_lea.sflag [#allocation3], 1
    %19 = vsyncpa %s18, 0
    loop: start=0, step=1, limit=6
    $region2: #{tpu_custom_call.1} parent=1 // loop_pre_header
      _
    $region3: #{tpu_custom_call.1} parent=1 // loop_header
      %s21 = sphi 0, %s25
      %p22 = scmp.ge.s32.totalorder %s21, 6
      %s31 = sphi 0, %s33
      %s34 = sphi 0, %s31
      %s35 = sphi 0, %s34
      %s51 = sphi 0, %s35
      %s55 = sphi 0, %s55
      %s57 = sphi 0, %s55
      %s58 = sphi 0, %s57
      %s72 = sphi 0, %s58
      %s76 = sphi 0, %s76
      %s78 = sphi 0, %s76
      %s79 = sphi 0, %s78
      %s93 = sphi 0, %s79
      %s97 = sphi 0, %s97
      %s99 = sphi 0, %s97
      %s100 = sphi 0, %s99
      %s114 = sphi 0, %s100
      %s118 = sphi 0, %s118
      %s120 = sphi 0, %s118
      %s121 = sphi 0, %s120
      %s135 = sphi 0, %s121
      %s139 = sphi 0, %s139
      %s141 = sphi 0, %s139
      %s142 = sphi 0, %s141
      %s156 = sphi 0, %s142
      %s160 = sphi 0, %s160
      %s162 = sphi 0, %s160
      %s163 = sphi 0, %s162
      %s177 = sphi 0, %s163
      %s181 = sphi 0, %s181
      %s183 = sphi 0, %s181
      %s184 = sphi 0, %s183
      %s198 = sphi 0, %s184
      %s202 = sphi 0, %s202
      %s204 = sphi 0, %s202
      %s205 = sphi 0, %s204
      %s219 = sphi 0, %s205
      %s223 = sphi 0, %s223
      %s225 = sphi 0, %s223
      %s226 = sphi 0, %s225
      %s240 = sphi 0, %s226
      %s244 = sphi 0, %s244
      %s246 = sphi 0, %s244
      %s247 = sphi 0, %s246
      %s261 = sphi 0, %s247
      %s265 = sphi 0, %s265
      %s267 = sphi 0, %s265
      %s268 = sphi 0, %s267
      %s282 = sphi 0, %s268
      %s288 = sphi 0, %s290
      %s291 = sphi 0, %s288
      %s292 = sphi 0, %s291
      %s308 = sphi 0, %s292
    $region4: #{tpu_custom_call.1} parent=1 // loop_header_branch
      %24 = sbr.rel (%p22) target = $region8
    $region5: #{tpu_custom_call.1} parent=1 // loop_body
      %s26 = ssub.s32 %s21, 1
      %s27 = ssub.s32 %s21, 2
      %s28 = sadd.s32 %s21, 1
      %s29 = ssub.s32 %s21, %s28
      %p30 = scmp.eq.s32.totalorder %s29, 0
      %s32 = sadd.s32 %s31, 1
      %s33 = scalar_select %p30, %s31, %s32
      %p36 = pneg %p30
      %p37 = scmp.eq.s32.totalorder %s21, 3
      %p38 = por %p36, %p37
      %p39 = scmp.ne.s32.totalorder %s31, %s34
      %p40 = scmp.eq.s32.totalorder %s21, 0
      %p41 = por %p39, %p40
      %p42 = scmp.ne.s32.totalorder %s31, %s34
      %p43 = scmp.eq.s32.totalorder %s26, 3
      %p44 = por %p42, %p43
      %p45 = scmp.ne.s32.totalorder %s34, %s35
      %p46 = scmp.eq.s32.totalorder %s26, 0
      %p47 = por %p45, %p46
      %p48 = scmp.ne.s32.totalorder %s34, %s35
      %p49 = scmp.eq.s32.totalorder %s27, 3
      %p50 = por %p48, %p49
      %p52 = scmp.ne.s32.totalorder %s35, %s51
      %p53 = scmp.eq.s32.totalorder %s27, 0
      %p54 = por %p52, %p53
      %s56 = sadd.s32 %s55, 1
      %p59 = scmp.eq.s32.totalorder %s21, 3
      %p60 = scmp.ne.s32.totalorder %s55, %s57
      %p61 = scmp.eq.s32.totalorder %s21, 0
      %p62 = por %p60, %p61
      %p63 = scmp.ne.s32.totalorder %s55, %s57
      %p64 = scmp.eq.s32.totalorder %s26, 3
      %p65 = por %p63, %p64
      %p66 = scmp.ne.s32.totalorder %s57, %s58
      %p67 = scmp.eq.s32.totalorder %s26, 0
      %p68 = por %p66, %p67
      %p69 = scmp.ne.s32.totalorder %s57, %s58
      %p70 = scmp.eq.s32.totalorder %s27, 3
      %p71 = por %p69, %p70
      %p73 = scmp.ne.s32.totalorder %s58, %s72
      %p74 = scmp.eq.s32.totalorder %s27, 0
      %p75 = por %p73, %p74
      %s77 = sadd.s32 %s76, 1
      %p80 = scmp.eq.s32.totalorder %s21, 3
      %p81 = scmp.ne.s32.totalorder %s76, %s78
      %p82 = scmp.eq.s32.totalorder %s21, 0
      %p83 = por %p81, %p82
      %p84 = scmp.ne.s32.totalorder %s76, %s78
      %p85 = scmp.eq.s32.totalorder %s26, 3
      %p86 = por %p84, %p85
      %p87 = scmp.ne.s32.totalorder %s78, %s79
      %p88 = scmp.eq.s32.totalorder %s26, 0
      %p89 = por %p87, %p88
      %p90 = scmp.ne.s32.totalorder %s78, %s79
      %p91 = scmp.eq.s32.totalorder %s27, 3
      %p92 = por %p90, %p91
      %p94 = scmp.ne.s32.totalorder %s79, %s93
      %p95 = scmp.eq.s32.totalorder %s27, 0
      %p96 = por %p94, %p95
      %s98 = sadd.s32 %s97, 1
      %p101 = scmp.eq.s32.totalorder %s21, 3
      %p102 = scmp.ne.s32.totalorder %s97, %s99
      %p103 = scmp.eq.s32.totalorder %s21, 0
      %p104 = por %p102, %p103
      %p105 = scmp.ne.s32.totalorder %s97, %s99
      %p106 = scmp.eq.s32.totalorder %s26, 3
      %p107 = por %p105, %p106
      %p108 = scmp.ne.s32.totalorder %s99, %s100
      %p109 = scmp.eq.s32.totalorder %s26, 0
      %p110 = por %p108, %p109
      %p111 = scmp.ne.s32.totalorder %s99, %s100
      %p112 = scmp.eq.s32.totalorder %s27, 3
      %p113 = por %p111, %p112
      %p115 = scmp.ne.s32.totalorder %s100, %s114
      %p116 = scmp.eq.s32.totalorder %s27, 0
      %p117 = por %p115, %p116
      %s119 = sadd.s32 %s118, 1
      %p122 = scmp.eq.s32.totalorder %s21, 3
      %p123 = scmp.ne.s32.totalorder %s118, %s120
      %p124 = scmp.eq.s32.totalorder %s21, 0
      %p125 = por %p123, %p124
      %p126 = scmp.ne.s32.totalorder %s118, %s120
      %p127 = scmp.eq.s32.totalorder %s26, 3
      %p128 = por %p126, %p127
      %p129 = scmp.ne.s32.totalorder %s120, %s121
      %p130 = scmp.eq.s32.totalorder %s26, 0
      %p131 = por %p129, %p130
      %p132 = scmp.ne.s32.totalorder %s120, %s121
      %p133 = scmp.eq.s32.totalorder %s27, 3
      %p134 = por %p132, %p133
      %p136 = scmp.ne.s32.totalorder %s121, %s135
      %p137 = scmp.eq.s32.totalorder %s27, 0
      %p138 = por %p136, %p137
      %s140 = sadd.s32 %s139, 1
      %p143 = scmp.eq.s32.totalorder %s21, 3
      %p144 = scmp.ne.s32.totalorder %s139, %s141
      %p145 = scmp.eq.s32.totalorder %s21, 0
      %p146 = por %p144, %p145
      %p147 = scmp.ne.s32.totalorder %s139, %s141
      %p148 = scmp.eq.s32.totalorder %s26, 3
      %p149 = por %p147, %p148
      %p150 = scmp.ne.s32.totalorder %s141, %s142
      %p151 = scmp.eq.s32.totalorder %s26, 0
      %p152 = por %p150, %p151
      %p153 = scmp.ne.s32.totalorder %s141, %s142
      %p154 = scmp.eq.s32.totalorder %s27, 3
      %p155 = por %p153, %p154
      %p157 = scmp.ne.s32.totalorder %s142, %s156
      %p158 = scmp.eq.s32.totalorder %s27, 0
      %p159 = por %p157, %p158
      %s161 = sadd.s32 %s160, 1
      %p164 = scmp.eq.s32.totalorder %s21, 3
      %p165 = scmp.ne.s32.totalorder %s160, %s162
      %p166 = scmp.eq.s32.totalorder %s21, 0
      %p167 = por %p165, %p166
      %p168 = scmp.ne.s32.totalorder %s160, %s162
      %p169 = scmp.eq.s32.totalorder %s26, 3
      %p170 = por %p168, %p169
      %p171 = scmp.ne.s32.totalorder %s162, %s163
      %p172 = scmp.eq.s32.totalorder %s26, 0
      %p173 = por %p171, %p172
      %p174 = scmp.ne.s32.totalorder %s162, %s163
      %p175 = scmp.eq.s32.totalorder %s27, 3
      %p176 = por %p174, %p175
      %p178 = scmp.ne.s32.totalorder %s163, %s177
      %p179 = scmp.eq.s32.totalorder %s27, 0
      %p180 = por %p178, %p179
      %s182 = sadd.s32 %s181, 1
      %p185 = scmp.eq.s32.totalorder %s21, 3
      %p186 = scmp.ne.s32.totalorder %s181, %s183
      %p187 = scmp.eq.s32.totalorder %s21, 0
      %p188 = por %p186, %p187
      %p189 = scmp.ne.s32.totalorder %s181, %s183
      %p190 = scmp.eq.s32.totalorder %s26, 3
      %p191 = por %p189, %p190
      %p192 = scmp.ne.s32.totalorder %s183, %s184
      %p193 = scmp.eq.s32.totalorder %s26, 0
      %p194 = por %p192, %p193
      %p195 = scmp.ne.s32.totalorder %s183, %s184
      %p196 = scmp.eq.s32.totalorder %s27, 3
      %p197 = por %p195, %p196
      %p199 = scmp.ne.s32.totalorder %s184, %s198
      %p200 = scmp.eq.s32.totalorder %s27, 0
      %p201 = por %p199, %p200
      %s203 = sadd.s32 %s202, 1
      %p206 = scmp.eq.s32.totalorder %s21, 3
      %p207 = scmp.ne.s32.totalorder %s202, %s204
      %p208 = scmp.eq.s32.totalorder %s21, 0
      %p209 = por %p207, %p208
      %p210 = scmp.ne.s32.totalorder %s202, %s204
      %p211 = scmp.eq.s32.totalorder %s26, 3
      %p212 = por %p210, %p211
      %p213 = scmp.ne.s32.totalorder %s204, %s205
      %p214 = scmp.eq.s32.totalorder %s26, 0
      %p215 = por %p213, %p214
      %p216 = scmp.ne.s32.totalorder %s204, %s205
      %p217 = scmp.eq.s32.totalorder %s27, 3
      %p218 = por %p216, %p217
      %p220 = scmp.ne.s32.totalorder %s205, %s219
      %p221 = scmp.eq.s32.totalorder %s27, 0
      %p222 = por %p220, %p221
      %s224 = sadd.s32 %s223, 1
      %p227 = scmp.eq.s32.totalorder %s21, 3
      %p228 = scmp.ne.s32.totalorder %s223, %s225
      %p229 = scmp.eq.s32.totalorder %s21, 0
      %p230 = por %p228, %p229
      %p231 = scmp.ne.s32.totalorder %s223, %s225
      %p232 = scmp.eq.s32.totalorder %s26, 3
      %p233 = por %p231, %p232
      %p234 = scmp.ne.s32.totalorder %s225, %s226
      %p235 = scmp.eq.s32.totalorder %s26, 0
      %p236 = por %p234, %p235
      %p237 = scmp.ne.s32.totalorder %s225, %s226
      %p238 = scmp.eq.s32.totalorder %s27, 3
      %p239 = por %p237, %p238
      %p241 = scmp.ne.s32.totalorder %s226, %s240
      %p242 = scmp.eq.s32.totalorder %s27, 0
      %p243 = por %p241, %p242
      %s245 = sadd.s32 %s244, 1
      %p248 = scmp.eq.s32.totalorder %s21, 3
      %p249 = scmp.ne.s32.totalorder %s244, %s246
      %p250 = scmp.eq.s32.totalorder %s21, 0
      %p251 = por %p249, %p250
      %p252 = scmp.ne.s32.totalorder %s244, %s246
      %p253 = scmp.eq.s32.totalorder %s26, 3
      %p254 = por %p252, %p253
      %p255 = scmp.ne.s32.totalorder %s246, %s247
      %p256 = scmp.eq.s32.totalorder %s26, 0
      %p257 = por %p255, %p256
      %p258 = scmp.ne.s32.totalorder %s246, %s247
      %p259 = scmp.eq.s32.totalorder %s27, 3
      %p260 = por %p258, %p259
      %p262 = scmp.ne.s32.totalorder %s247, %s261
      %p263 = scmp.eq.s32.totalorder %s27, 0
      %p264 = por %p262, %p263
      %s266 = sadd.s32 %s265, 1
      %p269 = scmp.eq.s32.totalorder %s21, 3
      %p270 = scmp.ne.s32.totalorder %s265, %s267
      %p271 = scmp.eq.s32.totalorder %s21, 0
      %p272 = por %p270, %p271
      %p273 = scmp.ne.s32.totalorder %s265, %s267
      %p274 = scmp.eq.s32.totalorder %s26, 3
      %p275 = por %p273, %p274
      %p276 = scmp.ne.s32.totalorder %s267, %s268
      %p277 = scmp.eq.s32.totalorder %s26, 0
      %p278 = por %p276, %p277
      %p279 = scmp.ne.s32.totalorder %s267, %s268
      %p280 = scmp.eq.s32.totalorder %s27, 3
      %p281 = por %p279, %p280
      %p283 = scmp.ne.s32.totalorder %s268, %s282
      %p284 = scmp.eq.s32.totalorder %s27, 0
      %p285 = por %p283, %p284
      %s286 = ssub.s32 %s21, %s28
      %p287 = scmp.eq.s32.totalorder %s286, 0
      %s289 = sadd.s32 %s288, 1
      %s290 = scalar_select %p287, %s288, %s289
      %p293 = pneg %p287
      %p294 = scmp.eq.s32.totalorder %s21, 3
      %p295 = por %p293, %p294
      %p296 = scmp.ne.s32.totalorder %s288, %s291
      %p297 = scmp.eq.s32.totalorder %s21, 0
      %p298 = por %p296, %p297
      %p299 = scmp.ne.s32.totalorder %s288, %s291
      %p300 = scmp.eq.s32.totalorder %s26, 3
      %p301 = por %p299, %p300
      %p302 = scmp.ne.s32.totalorder %s291, %s292
      %p303 = scmp.eq.s32.totalorder %s26, 0
      %p304 = por %p302, %p303
      %p305 = scmp.ne.s32.totalorder %s291, %s292
      %p306 = scmp.eq.s32.totalorder %s27, 3
      %p307 = por %p305, %p306
      %p309 = scmp.ne.s32.totalorder %s292, %s308
      %p310 = scmp.eq.s32.totalorder %s27, 0
      %p311 = por %p309, %p310
      %p312 = scmp.le.s32.totalorder 1, %s21
      %p313 = scmp.lt.s32.totalorder %s21, 5
      %p314 = pnand %p312, %p313
      %p315 = pneg %p314
      // Predicated region
      $region9: #{tpu_custom_call.1} parent=5 // pred_check
        _
      $region10: #{tpu_custom_call.1} parent=5 // pred_check_branch
        %317 = sbr.rel (%p314) target = $region12
      $region11: #{tpu_custom_call.1} parent=5 // pred_region
        %s318 = ssub.s32 %s21, 1
        // Predicated region
        $region13: #{tpu_custom_call.1} parent=11 // pred_check
          %p319 = pneg %p68
        $region14: #{tpu_custom_call.1} parent=11 // pred_check_branch
          %321 = sbr.rel (%p319) target = $region16
        $region15: #{tpu_custom_call.1} parent=11 // pred_region
          _
        $region16: #{tpu_custom_call.1} parent=11 // pred_fallthru
          _
        // Predicated region
        $region17: #{tpu_custom_call.1} parent=11 // pred_check
          %p322 = pneg %p89
        $region18: #{tpu_custom_call.1} parent=11 // pred_check_branch
          %324 = sbr.rel (%p322) target = $region20
        $region19: #{tpu_custom_call.1} parent=11 // pred_region
          _
        $region20: #{tpu_custom_call.1} parent=11 // pred_fallthru
          _
        // Predicated region
        $region21: #{tpu_custom_call.1} parent=11 // pred_check
          %p325 = pneg %p110
        $region22: #{tpu_custom_call.1} parent=11 // pred_check_branch
          %327 = sbr.rel (%p325) target = $region24
        $region23: #{tpu_custom_call.1} parent=11 // pred_region
          _
        $region24: #{tpu_custom_call.1} parent=11 // pred_fallthru
          _
        // Predicated region
        $region25: #{tpu_custom_call.1} parent=11 // pred_check
          %p328 = pneg %p131
        $region26: #{tpu_custom_call.1} parent=11 // pred_check_branch
          %330 = sbr.rel (%p328) target = $region28
        $region27: #{tpu_custom_call.1} parent=11 // pred_region
          _
        $region28: #{tpu_custom_call.1} parent=11 // pred_fallthru
          _
        // Predicated region
        $region29: #{tpu_custom_call.1} parent=11 // pred_check
          %p331 = pneg %p152
        $region30: #{tpu_custom_call.1} parent=11 // pred_check_branch
          %333 = sbr.rel (%p331) target = $region32
        $region31: #{tpu_custom_call.1} parent=11 // pred_region
          _
        $region32: #{tpu_custom_call.1} parent=11 // pred_fallthru
          _
        // Predicated region
        $region33: #{tpu_custom_call.1} parent=11 // pred_check
          %p334 = pneg %p173
        $region34: #{tpu_custom_call.1} parent=11 // pred_check_branch
          %336 = sbr.rel (%p334) target = $region36
        $region35: #{tpu_custom_call.1} parent=11 // pred_region
          _
        $region36: #{tpu_custom_call.1} parent=11 // pred_fallthru
          _
        // Predicated region
        $region37: #{tpu_custom_call.1} parent=11 // pred_check
          %p337 = pneg %p194
        $region38: #{tpu_custom_call.1} parent=11 // pred_check_branch
          %339 = sbr.rel (%p337) target = $region40
        $region39: #{tpu_custom_call.1} parent=11 // pred_region
          _
        $region40: #{tpu_custom_call.1} parent=11 // pred_fallthru
          _
        // Predicated region
        $region41: #{tpu_custom_call.1} parent=11 // pred_check
          %p340 = pneg %p215
        $region42: #{tpu_custom_call.1} parent=11 // pred_check_branch
          %342 = sbr.rel (%p340) target = $region44
        $region43: #{tpu_custom_call.1} parent=11 // pred_region
          _
        $region44: #{tpu_custom_call.1} parent=11 // pred_fallthru
          _
        // Predicated region
        $region45: #{tpu_custom_call.1} parent=11 // pred_check
          %p343 = pneg %p236
        $region46: #{tpu_custom_call.1} parent=11 // pred_check_branch
          %345 = sbr.rel (%p343) target = $region48
        $region47: #{tpu_custom_call.1} parent=11 // pred_region
          _
        $region48: #{tpu_custom_call.1} parent=11 // pred_fallthru
          _
        // Predicated region
        $region49: #{tpu_custom_call.1} parent=11 // pred_check
          %p346 = pneg %p257
        $region50: #{tpu_custom_call.1} parent=11 // pred_check_branch
          %348 = sbr.rel (%p346) target = $region52
        $region51: #{tpu_custom_call.1} parent=11 // pred_region
          _
        $region52: #{tpu_custom_call.1} parent=11 // pred_fallthru
          _
        // Predicated region
        $region53: #{tpu_custom_call.1} parent=11 // pred_check
          %p349 = pneg %p278
        $region54: #{tpu_custom_call.1} parent=11 // pred_check_branch
          %351 = sbr.rel (%p349) target = $region56
        $region55: #{tpu_custom_call.1} parent=11 // pred_region
          _
        $region56: #{tpu_custom_call.1} parent=11 // pred_fallthru
          _
      $region12: #{tpu_custom_call.1} parent=5 // pred_fallthru
        _
      %p352 = scmp.lt.s32.totalorder %s21, 4
      // Predicated region
      $region57: #{tpu_custom_call.1} parent=5 // pred_check
        %p353 = pneg %p352
      $region58: #{tpu_custom_call.1} parent=5 // pred_check_branch
        %355 = sbr.rel (%p353) target = $region60
      $region59: #{tpu_custom_call.1} parent=5 // pred_region
        // Predicated region
        $region61: #{tpu_custom_call.1} parent=59 // pred_check
          %p356 = pneg %p41
        $region62: #{tpu_custom_call.1} parent=59 // pred_check_branch
          %358 = sbr.rel (%p356) target = $region64
        $region63: #{tpu_custom_call.1} parent=59 // pred_region
          %p359 = scmp.lt.s32.totalorder %s21, 3
          %s360 = scalar_select %p359, %s21, 3
          %s361 = smul.addr %s360, 4
          %s362 = smul.addr %s361, 8
          %s363 = scalar_lea.vmem %s0, %s362
        $region64: #{tpu_custom_call.1} parent=59 // pred_fallthru
          _
      $region60: #{tpu_custom_call.1} parent=5 // pred_fallthru
        _
      %p364 = scmp.le.s32.totalorder 1, %s21
      %p365 = scmp.lt.s32.totalorder %s21, 5
      %p366 = pnand %p364, %p365
      %p367 = pneg %p366
      // Predicated region
      $region65: #{tpu_custom_call.1} parent=5 // pred_check
        _
      $region66: #{tpu_custom_call.1} parent=5 // pred_check_branch
        %369 = sbr.rel (%p366) target = $region68
      $region67: #{tpu_custom_call.1} parent=5 // pred_region
        %s370 = ssub.s32 %s21, 1
        %p371 = scmp.lt.s32.totalorder %s26, 3
        %s372 = scalar_select %p371, %s26, 3
        %s373 = smul.addr %s372, 4
        %s374 = smul.addr %s373, 8
        %s375 = scalar_lea.vmem %s0, %s374
        %p376 = pneg %p47
        %p377 = pneg %p44
        %p378 = pneg %p68
        %p379 = pneg %p65
        %p380 = pneg %p89
        %p381 = pneg %p86
        %p382 = pneg %p110
        %p383 = pneg %p107
        %p384 = pneg %p131
        %p385 = pneg %p128
        %p386 = pneg %p152
        %p387 = pneg %p149
        %p388 = pneg %p173
        %p389 = pneg %p170
        %p390 = pneg %p194
        %p391 = pneg %p191
        %p392 = pneg %p215
        %p393 = pneg %p212
        %p394 = pneg %p236
        %p395 = pneg %p233
        %p396 = pneg %p257
        %p397 = pneg %p254
        %p398 = pneg %p278
        %p399 = pneg %p275
        %p400 = pneg %p304
        %p401 = pneg %p301
        %s402 = sand.u32 %s291, 1
        %s403 = scalar_lea.sflag [#allocation3], %s402
        %s404 = sand.u32 %s291, 1
        %s405 = smul.addr %s404, 32
        %s406 = scalar_lea.vmem [#allocation2], %s405
        %p407 = scmp.lt.s32.totalorder %s26, 3
        %s408 = scalar_select %p407, %s26, 3
        %s409 = smul.addr %s408, 4
        %s410 = smul.addr %s409, 8
        %s411 = scalar_lea.vmem %s0, %s410
        %v413 = vld [vmem:[%s411] sm:$0xff]
        %v414 = vld [vmem:[%s411 + $0x8] sm:$0xff]
        %v415 = vld [vmem:[%s411 + $0x10] sm:$0xff]
        %v416 = vld [vmem:[%s411 + $0x18] sm:$0xff]
        %v417 = vpack.c.bf16 %v415, %v413
        %v418 = vpack.c.bf16 %v416, %v414
        %v419 = vld [vmem:[%s2] sm:$0xf]
        %v420 = vld [vmem:[%s2 + $0x4] sm:$0xf]
        %v421 = vld [vmem:[%s3] sm:$0xff]
        %v422 = vld [vmem:[%s3 + $0x8] sm:$0xff]
        %424 = vset.pattern.permute.xlu0 0
        %425 = vperm.xlu0 %424, %v421
        %v426 = vpop.permute.xlu0 %425
        %429 = vset.pattern.permute.xlu0 0
        %430 = vperm.xlu0 %429, %v422
        %v431 = vpop.permute.xlu0 %430
        %v435 = vunpack.c.l.b16 %v419
        %v436 = vunpack.c.l.b16 %v420
        %v437 = vpack.c.b16 %v436, %v435
        %vm438 = vcmask 130048
        %v440 = vsel %vm438, %v437, 0
        %442 = vmatpush.bf16.msra.mxu0 0
        %443 = vmatpush.bf16.msra.mxu0 0
        %444 = vmatpush.bf16.msra.mxu0 0
        %445 = vmatpush.bf16.msra.mxu0 0
        %446 = vmatpush.bf16.msra.mxu0 0
        %447 = vmatpush.bf16.msra.mxu0 0
        %448 = vmatpush.bf16.msra.mxu0 0
        %449 = vmatpush.bf16.msra.mxu0 %v417
        %450 = vmatmul.bf16.gmra.mxu0 %v440
        %v451 = vpop.f32.mrf.mxu0
        %v452 = vadd.f32 %v426, %v451
        %v453 = vpop.f32.mrf.mxu0
        %v454 = vadd.f32 %v431, %v453
        %455 = vdwg.mxu0
        %456 = vmatpush.bf16.msra.mxu0 0
        %457 = vmatpush.bf16.msra.mxu0 0
        %458 = vmatpush.bf16.msra.mxu0 0
        %459 = vmatpush.bf16.msra.mxu0 0
        %460 = vmatpush.bf16.msra.mxu0 0
        %461 = vmatpush.bf16.msra.mxu0 0
        %462 = vmatpush.bf16.msra.mxu0 0
        %463 = vmatpush.bf16.msra.mxu0 %v418
        %464 = vmatmul.bf16.gmra.mxu0 %v440
        %v465 = vpop.f32.mrf.mxu0
        %v466 = vadd.f32 %v426, %v465
        %v467 = vpop.f32.mrf.mxu0
        %v468 = vadd.f32 %v431, %v467
        %469 = vdwg.mxu0
        %v470 = vmax.f32 %v452, 0.0
        %v471 = vmax.f32 %v466, 0.0
        %v472 = vmax.f32 %v454, 0.0
        %v473 = vmax.f32 %v468, 0.0
        %s474 = scalar_lea.vmem %s4, 64
        %v475 = vld [vmem:[%s474] sm:$0xff]
        %v476 = vld [vmem:[%s474 + $0x8] sm:$0xff]
        %478 = vset.pattern.permute.xlu0 0
        %479 = vperm.xlu0 %478, %v475
        %v480 = vpop.permute.xlu0 %479
        %483 = vset.pattern.permute.xlu0 0
        %484 = vperm.xlu0 %483, %v476
        %v485 = vpop.permute.xlu0 %484
        %v487 = vmul.f32 %v470, %v480
        %v488 = vmul.f32 %v471, %v480
        %v489 = vmul.f32 %v472, %v485
        %v490 = vmul.f32 %v473, %v485
        %491 = vrot.lane.b32.xlu0 %v470, 17
        %v492 = vpop.permute.xlu0 %491
        %493 = vrot.lane.b32.xlu0 %v472, 17
        %v494 = vpop.permute.xlu0 %493
        %495 = vrot.lane.b32.xlu0 %v471, 17
        %v496 = vpop.permute.xlu0 %495
        %497 = vrot.lane.b32.xlu0 %v473, 17
        %v498 = vpop.permute.xlu0 %497
        %v499 = vlaneseq
        %v500 = vand.u32 %v499, 127
        %vm501 = vcmp.lt.s32.totalorder %v500, 17
        %v502 = vsel %vm501, %v492, %v496
        %v503 = vsel %vm501, %v494, %v498
        %v504 = vsel %vm501, %v496, %v492
        %v505 = vsel %vm501, %v498, %v494
        %v506 = vld [vmem:[%s1] sm:$0x3]
        %v508 = vperm.slane %v506, 0
        %v509 = vperm.slane %v506, 1
        %v512 = vmul.f32 %v504, %v508
        %v513 = vmul.f32 %v502, %v509
        %v514 = vmul.f32 %v505, %v508
        %v515 = vmul.f32 %v503, %v509
        %v516 = vld [vmem:[%s4] sm:$0xff]
        %v517 = vld [vmem:[%s4 + $0x8] sm:$0xff]
        %519 = vset.pattern.permute.xlu0 0
        %520 = vperm.xlu0 %519, %v516
        %v521 = vpop.permute.xlu0 %520
        %524 = vset.pattern.permute.xlu0 0
        %525 = vperm.xlu0 %524, %v517
        %v526 = vpop.permute.xlu0 %525
        %v528 = vmul.f32 %v512, %v521
        %v529 = vmul.f32 %v513, %v521
        %v530 = vmul.f32 %v514, %v526
        %v531 = vmul.f32 %v515, %v526
        %v532 = vadd.f32 %v487, %v528
        %v533 = vadd.f32 %v488, %v529
        %v534 = vadd.f32 %v489, %v530
        %v535 = vadd.f32 %v490, %v531
        %536 = vrot.lane.b32.xlu0 %v470, 16
        %v537 = vpop.permute.xlu0 %536
        %538 = vrot.lane.b32.xlu0 %v472, 16
        %v539 = vpop.permute.xlu0 %538
        %540 = vrot.lane.b32.xlu0 %v471, 16
        %v541 = vpop.permute.xlu0 %540
        %542 = vrot.lane.b32.xlu0 %v473, 16
        %v543 = vpop.permute.xlu0 %542
        %vm544 = vcmp.lt.s32.totalorder %v500, 16
        %v545 = vsel %vm544, %v537, %v541
        %v546 = vsel %vm544, %v539, %v543
        %v547 = vsel %vm544, %v541, %v537
        %v548 = vsel %vm544, %v543, %v539
        %s549 = scalar_lea.vmem %s1, 2
        %v550 = vld [vmem:[%s549] sm:$0x3]
        %v552 = vperm.slane %v550, 0
        %v553 = vperm.slane %v550, 1
        %v556 = vmul.f32 %v547, %v552
        %v557 = vmul.f32 %v545, %v553
        %v558 = vmul.f32 %v548, %v552
        %v559 = vmul.f32 %v546, %v553
        %s560 = scalar_lea.vmem %s4, 16
        %v561 = vld [vmem:[%s560] sm:$0xff]
        %v562 = vld [vmem:[%s560 + $0x8] sm:$0xff]
        %564 = vset.pattern.permute.xlu0 0
        %565 = vperm.xlu0 %564, %v561
        %v566 = vpop.permute.xlu0 %565
        %569 = vset.pattern.permute.xlu0 0
        %570 = vperm.xlu0 %569, %v562
        %v571 = vpop.permute.xlu0 %570
        %v573 = vmul.f32 %v556, %v566
        %v574 = vmul.f32 %v557, %v566
        %v575 = vmul.f32 %v558, %v571
        %v576 = vmul.f32 %v559, %v571
        %v577 = vadd.f32 %v532, %v573
        %v578 = vadd.f32 %v533, %v574
        %v579 = vadd.f32 %v534, %v575
        %v580 = vadd.f32 %v535, %v576
        %581 = vrot.lane.b32.xlu0 %v470, 15
        %v582 = vpop.permute.xlu0 %581
        %583 = vrot.lane.b32.xlu0 %v472, 15
        %v584 = vpop.permute.xlu0 %583
        %585 = vrot.lane.b32.xlu0 %v471, 15
        %v586 = vpop.permute.xlu0 %585
        %587 = vrot.lane.b32.xlu0 %v473, 15
        %v588 = vpop.permute.xlu0 %587
        %vm589 = vcmp.lt.s32.totalorder %v500, 15
        %v590 = vsel %vm589, %v582, %v586
        %v591 = vsel %vm589, %v584, %v588
        %v592 = vsel %vm589, %v586, %v582
        %v593 = vsel %vm589, %v588, %v584
        %s594 = scalar_lea.vmem %s1, 4
        %v595 = vld [vmem:[%s594] sm:$0x3]
        %v597 = vperm.slane %v595, 0
        %v598 = vperm.slane %v595, 1
        %v601 = vmul.f32 %v592, %v597
        %v602 = vmul.f32 %v590, %v598
        %v603 = vmul.f32 %v593, %v597
        %v604 = vmul.f32 %v591, %v598
        %s605 = scalar_lea.vmem %s4, 32
        %v606 = vld [vmem:[%s605] sm:$0xff]
        %v607 = vld [vmem:[%s605 + $0x8] sm:$0xff]
        %609 = vset.pattern.permute.xlu0 0
        %610 = vperm.xlu0 %609, %v606
        %v611 = vpop.permute.xlu0 %610
        %614 = vset.pattern.permute.xlu0 0
        %615 = vperm.xlu0 %614, %v607
        %v616 = vpop.permute.xlu0 %615
        %v618 = vmul.f32 %v601, %v611
        %v619 = vmul.f32 %v602, %v611
        %v620 = vmul.f32 %v603, %v616
        %v621 = vmul.f32 %v604, %v616
        %v622 = vadd.f32 %v577, %v618
        %v623 = vadd.f32 %v578, %v619
        %v624 = vadd.f32 %v579, %v620
        %v625 = vadd.f32 %v580, %v621
        %626 = vrot.lane.b32.xlu0 %v470, 1
        %v627 = vpop.permute.xlu0 %626
        %628 = vrot.lane.b32.xlu0 %v472, 1
        %v629 = vpop.permute.xlu0 %628
        %630 = vrot.lane.b32.xlu0 %v471, 1
        %v631 = vpop.permute.xlu0 %630
        %632 = vrot.lane.b32.xlu0 %v473, 1
        %v633 = vpop.permute.xlu0 %632
        %vm634 = vcmp.lt.s32.totalorder %v500, 1
        %v635 = vsel %vm634, %v627, %v631
        %v636 = vsel %vm634, %v629, %v633
        %v637 = vsel %vm634, %v631, %v627
        %v638 = vsel %vm634, %v633, %v629
        %s639 = scalar_lea.vmem %s1, 6
        %v640 = vld [vmem:[%s639] sm:$0x3]
        %v642 = vperm.slane %v640, 0
        %v643 = vperm.slane %v640, 1
        %v646 = vmul.f32 %v637, %v642
        %v647 = vmul.f32 %v635, %v643
        %v648 = vmul.f32 %v638, %v642
        %v649 = vmul.f32 %v636, %v643
        %s650 = scalar_lea.vmem %s4, 48
        %v651 = vld [vmem:[%s650] sm:$0xff]
        %v652 = vld [vmem:[%s650 + $0x8] sm:$0xff]
        %654 = vset.pattern.permute.xlu0 0
        %655 = vperm.xlu0 %654, %v651
        %v656 = vpop.permute.xlu0 %655
        %659 = vset.pattern.permute.xlu0 0
        %660 = vperm.xlu0 %659, %v652
        %v661 = vpop.permute.xlu0 %660
        %v663 = vmul.f32 %v646, %v656
        %v664 = vmul.f32 %v647, %v656
        %v665 = vmul.f32 %v648, %v661
        %v666 = vmul.f32 %v649, %v661
        %v667 = vadd.f32 %v622, %v663
        %v668 = vadd.f32 %v623, %v664
        %v669 = vadd.f32 %v624, %v665
        %v670 = vadd.f32 %v625, %v666
        %671 = vrot.lane.b32.xlu0 %v470, 127
        %v672 = vpop.permute.xlu0 %671
        %673 = vrot.lane.b32.xlu0 %v472, 127
        %v674 = vpop.permute.xlu0 %673
        %675 = vrot.lane.b32.xlu0 %v471, 127
        %v676 = vpop.permute.xlu0 %675
        %677 = vrot.lane.b32.xlu0 %v473, 127
        %v678 = vpop.permute.xlu0 %677
        %vm679 = vcmp.lt.s32.totalorder %v500, 127
        %v680 = vsel %vm679, %v672, %v676
        %v681 = vsel %vm679, %v674, %v678
        %v682 = vsel %vm679, %v676, %v672
        %v683 = vsel %vm679, %v678, %v674
        %s684 = scalar_lea.vmem %s1, 10
        %v685 = vld [vmem:[%s684] sm:$0x3]
        %v687 = vperm.slane %v685, 0
        %v688 = vperm.slane %v685, 1
        %v691 = vmul.f32 %v680, %v687
        %v692 = vmul.f32 %v682, %v688
        %v693 = vmul.f32 %v681, %v687
        %v694 = vmul.f32 %v683, %v688
        %s695 = scalar_lea.vmem %s4, 80
        %v696 = vld [vmem:[%s695] sm:$0xff]
        %v697 = vld [vmem:[%s695 + $0x8] sm:$0xff]
        %699 = vset.pattern.permute.xlu0 0
        %700 = vperm.xlu0 %699, %v696
        %v701 = vpop.permute.xlu0 %700
        %704 = vset.pattern.permute.xlu0 0
        %705 = vperm.xlu0 %704, %v697
        %v706 = vpop.permute.xlu0 %705
        %v708 = vmul.f32 %v691, %v701
        %v709 = vmul.f32 %v692, %v701
        %v710 = vmul.f32 %v693, %v706
        %v711 = vmul.f32 %v694, %v706
        %v712 = vadd.f32 %v667, %v708
        %v713 = vadd.f32 %v668, %v709
        %v714 = vadd.f32 %v669, %v710
        %v715 = vadd.f32 %v670, %v711
        %716 = vrot.lane.b32.xlu0 %v470, 113
        %v717 = vpop.permute.xlu0 %716
        %718 = vrot.lane.b32.xlu0 %v472, 113
        %v719 = vpop.permute.xlu0 %718
        %720 = vrot.lane.b32.xlu0 %v471, 113
        %v721 = vpop.permute.xlu0 %720
        %722 = vrot.lane.b32.xlu0 %v473, 113
        %v723 = vpop.permute.xlu0 %722
        %vm724 = vcmp.lt.s32.totalorder %v500, 113
        %v725 = vsel %vm724, %v717, %v721
        %v726 = vsel %vm724, %v719, %v723
        %v727 = vsel %vm724, %v721, %v717
        %v728 = vsel %vm724, %v723, %v719
        %s729 = scalar_lea.vmem %s1, 12
        %v730 = vld [vmem:[%s729] sm:$0x3]
        %v732 = vperm.slane %v730, 0
        %v733 = vperm.slane %v730, 1
        %v736 = vmul.f32 %v725, %v732
        %v737 = vmul.f32 %v727, %v733
        %v738 = vmul.f32 %v726, %v732
        %v739 = vmul.f32 %v728, %v733
        %s740 = scalar_lea.vmem %s4, 96
        %v741 = vld [vmem:[%s740] sm:$0xff]
        %v742 = vld [vmem:[%s740 + $0x8] sm:$0xff]
        %744 = vset.pattern.permute.xlu0 0
        %745 = vperm.xlu0 %744, %v741
        %v746 = vpop.permute.xlu0 %745
        %749 = vset.pattern.permute.xlu0 0
        %750 = vperm.xlu0 %749, %v742
        %v751 = vpop.permute.xlu0 %750
        %v753 = vmul.f32 %v736, %v746
        %v754 = vmul.f32 %v737, %v746
        %v755 = vmul.f32 %v738, %v751
        %v756 = vmul.f32 %v739, %v751
        %v757 = vadd.f32 %v712, %v753
        %v758 = vadd.f32 %v713, %v754
        %v759 = vadd.f32 %v714, %v755
        %v760 = vadd.f32 %v715, %v756
        %761 = vrot.lane.b32.xlu0 %v470, 112
        %v762 = vpop.permute.xlu0 %761
        %763 = vrot.lane.b32.xlu0 %v472, 112
        %v764 = vpop.permute.xlu0 %763
        %765 = vrot.lane.b32.xlu0 %v471, 112
        %v766 = vpop.permute.xlu0 %765
        %767 = vrot.lane.b32.xlu0 %v473, 112
        %v768 = vpop.permute.xlu0 %767
        %vm769 = vcmp.lt.s32.totalorder %v500, 112
        %v770 = vsel %vm769, %v762, %v766
        %v771 = vsel %vm769, %v764, %v768
        %v772 = vsel %vm769, %v766, %v762
        %v773 = vsel %vm769, %v768, %v764
        %s774 = scalar_lea.vmem %s1, 14
        %v775 = vld [vmem:[%s774] sm:$0x3]
        %v777 = vperm.slane %v775, 0
        %v778 = vperm.slane %v775, 1
        %v781 = vmul.f32 %v770, %v777
        %v782 = vmul.f32 %v772, %v778
        %v783 = vmul.f32 %v771, %v777
        %v784 = vmul.f32 %v773, %v778
        %s785 = scalar_lea.vmem %s4, 112
        %v786 = vld [vmem:[%s785] sm:$0xff]
        %v787 = vld [vmem:[%s785 + $0x8] sm:$0xff]
        %789 = vset.pattern.permute.xlu0 0
        %790 = vperm.xlu0 %789, %v786
        %v791 = vpop.permute.xlu0 %790
        %794 = vset.pattern.permute.xlu0 0
        %795 = vperm.xlu0 %794, %v787
        %v796 = vpop.permute.xlu0 %795
        %v798 = vmul.f32 %v781, %v791
        %v799 = vmul.f32 %v782, %v791
        %v800 = vmul.f32 %v783, %v796
        %v801 = vmul.f32 %v784, %v796
        %v802 = vadd.f32 %v757, %v798
        %v803 = vadd.f32 %v758, %v799
        %v804 = vadd.f32 %v759, %v800
        %v805 = vadd.f32 %v760, %v801
        %806 = vrot.lane.b32.xlu0 %v470, 111
        %v807 = vpop.permute.xlu0 %806
        %808 = vrot.lane.b32.xlu0 %v472, 111
        %v809 = vpop.permute.xlu0 %808
        %810 = vrot.lane.b32.xlu0 %v471, 111
        %v811 = vpop.permute.xlu0 %810
        %812 = vrot.lane.b32.xlu0 %v473, 111
        %v813 = vpop.permute.xlu0 %812
        %vm814 = vcmp.lt.s32.totalorder %v500, 111
        %v815 = vsel %vm814, %v807, %v811
        %v816 = vsel %vm814, %v809, %v813
        %v817 = vsel %vm814, %v811, %v807
        %v818 = vsel %vm814, %v813, %v809
        %s819 = scalar_lea.vmem %s1, 16
        %v820 = vld [vmem:[%s819] sm:$0x3]
        %v822 = vperm.slane %v820, 0
        %v823 = vperm.slane %v820, 1
        %v826 = vmul.f32 %v815, %v822
        %v827 = vmul.f32 %v817, %v823
        %v828 = vmul.f32 %v816, %v822
        %v829 = vmul.f32 %v818, %v823
        %s830 = scalar_lea.vmem %s4, 128
        %v831 = vld [vmem:[%s830] sm:$0xff]
        %v832 = vld [vmem:[%s830 + $0x8] sm:$0xff]
        %834 = vset.pattern.permute.xlu0 0
        %835 = vperm.xlu0 %834, %v831
        %v836 = vpop.permute.xlu0 %835
        %839 = vset.pattern.permute.xlu0 0
        %840 = vperm.xlu0 %839, %v832
        %v841 = vpop.permute.xlu0 %840
        %v843 = vmul.f32 %v826, %v836
        %v844 = vmul.f32 %v827, %v836
        %v845 = vmul.f32 %v828, %v841
        %v846 = vmul.f32 %v829, %v841
        %v847 = vadd.f32 %v802, %v843
        %v848 = vadd.f32 %v803, %v844
        %v849 = vadd.f32 %v804, %v845
        %v850 = vadd.f32 %v805, %v846
        %s851 = scalar_lea.vmem %s3, 16
        %v852 = vld [vmem:[%s851] sm:$0xff]
        %v853 = vld [vmem:[%s851 + $0x8] sm:$0xff]
        %855 = vset.pattern.permute.xlu0 0
        %856 = vperm.xlu0 %855, %v852
        %v857 = vpop.permute.xlu0 %856
        %860 = vset.pattern.permute.xlu0 0
        %861 = vperm.xlu0 %860, %v853
        %v862 = vpop.permute.xlu0 %861
        %v864 = vadd.f32 %v847, %v857
        %v865 = vadd.f32 %v848, %v857
        %v866 = vadd.f32 %v849, %v862
        %v867 = vadd.f32 %v850, %v862
        %v868 = vmax.f32 %v864, 0.0
        %v869 = vmax.f32 %v865, 0.0
        %v870 = vmax.f32 %v866, 0.0
        %v871 = vmax.f32 %v867, 0.0
        %v872 = vadd.f32 %v470, %v471
        %873 = vadd.xlane.f32.xlu0 %v872
        %v874 = vpop.xlane.xlu0 %873
        %v875 = vadd.f32 %v472, %v473
        %876 = vadd.xlane.f32.xlu0 %v875
        %v877 = vpop.xlane.xlu0 %876
        %v878 = vmul.f32 %v874, 0.00390625
        %v879 = vmul.f32 %v877, 0.00390625
        %v880 = vadd.f32 %v868, %v869
        %881 = vadd.xlane.f32.xlu0 %v880
        %v882 = vpop.xlane.xlu0 %881
        %v883 = vadd.f32 %v870, %v871
        %884 = vadd.xlane.f32.xlu0 %v883
        %v885 = vpop.xlane.xlu0 %884
        %v886 = vmul.f32 %v882, 0.00390625
        %v887 = vmul.f32 %v885, 0.00390625
        %v888 = vld [vmem:[%s5] sm:$0xff]
        %s889 = scalar_lea.vmem %s5, 8
        %v890 = vld [vmem:[%s889] sm:$0xff]
        %v892 = vsel %vm438, %v890, 0
        %894 = vmatpush.msra.mxu0 0.0
        %895 = vmatpush.msra.mxu0 0.0
        %896 = vmatpush.msra.mxu0 0.0
        %897 = vmatpush.msra.mxu0 0.0
        %898 = vmatpush.msra.mxu0 0.0
        %899 = vmatpush.msra.mxu0 0.0
        %900 = vmatpush.msra.mxu0 0.0
        %901 = vmatpush.msra.mxu0 0.0
        %902 = vmatpush.msra.mxu0 0.0
        %903 = vmatpush.msra.mxu0 0.0
        %904 = vmatpush.msra.mxu0 0.0
        %905 = vmatpush.msra.mxu0 0.0
        %906 = vmatpush.msra.mxu0 0.0
        %907 = vmatpush.msra.mxu0 0.0
        %908 = vmatpush.msra.mxu0 %v887
        %909 = vmatpush.msra.mxu0 %v886
        %910 = vmatmul.f32.gmra.mxu0 %v892
        %v911 = vpop.f32.mrf.mxu0
        %v912 = vadd.f32 0.0, %v911
        %913 = vdwg.mxu0
        %v915 = vsel %vm438, %v888, 0
        %917 = vmatpush.msra.mxu0 0.0
        %918 = vmatpush.msra.mxu0 0.0
        %919 = vmatpush.msra.mxu0 0.0
        %920 = vmatpush.msra.mxu0 0.0
        %921 = vmatpush.msra.mxu0 0.0
        %922 = vmatpush.msra.mxu0 0.0
        %923 = vmatpush.msra.mxu0 0.0
        %924 = vmatpush.msra.mxu0 0.0
        %925 = vmatpush.msra.mxu0 0.0
        %926 = vmatpush.msra.mxu0 0.0
        %927 = vmatpush.msra.mxu0 0.0
        %928 = vmatpush.msra.mxu0 0.0
        %929 = vmatpush.msra.mxu0 0.0
        %930 = vmatpush.msra.mxu0 0.0
        %931 = vmatpush.msra.mxu0 %v879
        %932 = vmatpush.msra.mxu0 %v878
        %933 = vmatmul.f32.gmra.mxu0 %v915
        %v934 = vpop.f32.mrf.mxu0
        %v935 = vadd.f32 %v912, %v934
        %936 = vdwg.mxu0
        %v937 = vld [vmem:[%s6] sm:$0xff]
        %v938 = vadd.f32 %v935, %v937
        %v939 = vmax.f32 %v938, 0.0
        %v940 = vld [vmem:[%s7] sm:$0xff]
        %v941 = vld [vmem:[%s7 + $0x8] sm:$0xff]
        %v942 = vld [vmem:[%s8] sm:$0xff]
        %v943 = vld [vmem:[%s8 + $0x8] sm:$0xff]
        %vm944 = vcmask 64512
        %v946 = vsel %vm944, %v940, 0
        %v949 = vsel %vm944, %v941, 0
        %951 = vmatpush.msra.mxu0 0.0
        %952 = vmatpush.msra.mxu0 0.0
        %953 = vmatpush.msra.mxu0 0.0
        %954 = vmatpush.msra.mxu0 0.0
        %955 = vmatpush.msra.mxu0 0.0
        %956 = vmatpush.msra.mxu0 0.0
        %957 = vmatpush.msra.mxu0 0.0
        %958 = vmatpush.msra.mxu0 0.0
        %959 = vmatpush.msra.mxu0 0.0
        %960 = vmatpush.msra.mxu0 0.0
        %961 = vmatpush.msra.mxu0 0.0
        %962 = vmatpush.msra.mxu0 0.0
        %963 = vmatpush.msra.mxu0 0.0
        %964 = vmatpush.msra.mxu0 0.0
        %965 = vmatpush.msra.mxu0 0.0
        %966 = vmatpush.msra.mxu0 %v939
        %967 = vmatmul.f32.gmra.mxu0 %v946
        %v968 = vpop.f32.mrf.mxu0
        %v969 = vadd.f32 %v942, %v968
        %970 = vmatmul.f32.gmra.mxu0 %v949
        %v971 = vpop.f32.mrf.mxu0
        %v972 = vadd.f32 %v943, %v971
        %973 = vdwg.mxu0
        %v974 = vmax.f32 %v969, 0.0
        %v975 = vmax.f32 %v972, 0.0
        %v976 = vmin.f32 %v974, 1.0
        %v977 = vmin.f32 %v975, 1.0
        %s978 = scalar_lea.vmem %s7, 16
        %v979 = vld [vmem:[%s978] sm:$0xff]
        %v980 = vld [vmem:[%s978 + $0x8] sm:$0xff]
        %s981 = scalar_lea.vmem %s8, 16
        %v982 = vld [vmem:[%s981] sm:$0xff]
        %v983 = vld [vmem:[%s981 + $0x8] sm:$0xff]
        %v985 = vsel %vm944, %v979, 0
        %v988 = vsel %vm944, %v980, 0
        %990 = vmatpush.msra.mxu0 0.0
        %991 = vmatpush.msra.mxu0 0.0
        %992 = vmatpush.msra.mxu0 0.0
        %993 = vmatpush.msra.mxu0 0.0
        %994 = vmatpush.msra.mxu0 0.0
        %995 = vmatpush.msra.mxu0 0.0
        %996 = vmatpush.msra.mxu0 0.0
        %997 = vmatpush.msra.mxu0 0.0
        %998 = vmatpush.msra.mxu0 0.0
        %999 = vmatpush.msra.mxu0 0.0
        %1000 = vmatpush.msra.mxu0 0.0
        %1001 = vmatpush.msra.mxu0 0.0
        %1002 = vmatpush.msra.mxu0 0.0
        %1003 = vmatpush.msra.mxu0 0.0
        %1004 = vmatpush.msra.mxu0 0.0
        %1005 = vmatpush.msra.mxu0 %v939
        %1006 = vmatmul.f32.gmra.mxu0 %v985
        %v1007 = vpop.f32.mrf.mxu0
        %v1008 = vadd.f32 %v982, %v1007
        %1009 = vmatmul.f32.gmra.mxu0 %v988
        %v1010 = vpop.f32.mrf.mxu0
        %v1011 = vadd.f32 %v983, %v1010
        %1012 = vdwg.mxu0
        %v1013 = vmax.f32 %v1008, 0.0
        %v1014 = vmax.f32 %v1011, 0.0
        %v1015 = vmin.f32 %v1013, 1.0
        %v1016 = vmin.f32 %v1014, 1.0
        %1018 = vset.pattern.permute.xlu0 0
        %1019 = vperm.xlu0 %1018, %v976
        %v1020 = vpop.permute.xlu0 %1019
        %1023 = vset.pattern.permute.xlu0 0
        %1024 = vperm.xlu0 %1023, %v977
        %v1025 = vpop.permute.xlu0 %1024
        %v1027 = vmul.f32 %v470, %v1020
        %v1028 = vmul.f32 %v471, %v1020
        %v1029 = vmul.f32 %v472, %v1025
        %v1030 = vmul.f32 %v473, %v1025
        %1032 = vset.pattern.permute.xlu0 0
        %1033 = vperm.xlu0 %1032, %v1015
        %v1034 = vpop.permute.xlu0 %1033
        %1037 = vset.pattern.permute.xlu0 0
        %1038 = vperm.xlu0 %1037, %v1016
        %v1039 = vpop.permute.xlu0 %1038
        %v1041 = vmul.f32 %v868, %v1034
        %v1042 = vmul.f32 %v869, %v1034
        %v1043 = vmul.f32 %v870, %v1039
        %v1044 = vmul.f32 %v871, %v1039
        %v1045 = vld [vmem:[%s9] sm:$0xf]
        %v1046 = vpack.c.bf16 %v1029, %v1027
        %v1047 = vpack.c.bf16 %v1030, %v1028
        %s1048 = scalar_lea.vmem %s9, 4
        %v1049 = vld [vmem:[%s1048] sm:$0xf]
        %v1050 = vpack.c.bf16 %v1043, %v1041
        %v1051 = vpack.c.bf16 %v1044, %v1042
        %v1053 = vsel %vm438, %v1049, 0
        %1055 = vmatpush.bf16.msra.mxu0 0
        %1056 = vmatpush.bf16.msra.mxu0 0
        %1057 = vmatpush.bf16.msra.mxu0 0
        %1058 = vmatpush.bf16.msra.mxu0 0
        %1059 = vmatpush.bf16.msra.mxu0 0
        %1060 = vmatpush.bf16.msra.mxu0 0
        %1061 = vmatpush.bf16.msra.mxu0 0
        %1062 = vmatpush.bf16.msra.mxu0 %v1050
        %1063 = vmatmul.bf16.gmra.mxu0 %v1053
        %v1064 = vpop.f32.mrf.mxu0
        %v1065 = vadd.f32 0.0, %v1064
        %v1066 = vpop.f32.mrf.mxu0
        %1067 = vdwg.mxu0
        %1068 = vmatpush.bf16.msra.mxu0 0
        %1069 = vmatpush.bf16.msra.mxu0 0
        %1070 = vmatpush.bf16.msra.mxu0 0
        %1071 = vmatpush.bf16.msra.mxu0 0
        %1072 = vmatpush.bf16.msra.mxu0 0
        %1073 = vmatpush.bf16.msra.mxu0 0
        %1074 = vmatpush.bf16.msra.mxu0 0
        %1075 = vmatpush.bf16.msra.mxu0 %v1051
        %1076 = vmatmul.bf16.gmra.mxu0 %v1053
        %v1077 = vpop.f32.mrf.mxu0
        %v1078 = vadd.f32 0.0, %v1077
        %v1079 = vpop.f32.mrf.mxu0
        %1080 = vdwg.mxu0
        %v1082 = vsel %vm438, %v1045, 0
        %1084 = vmatpush.bf16.msra.mxu0 0
        %1085 = vmatpush.bf16.msra.mxu0 0
        %1086 = vmatpush.bf16.msra.mxu0 0
        %1087 = vmatpush.bf16.msra.mxu0 0
        %1088 = vmatpush.bf16.msra.mxu0 0
        %1089 = vmatpush.bf16.msra.mxu0 0
        %1090 = vmatpush.bf16.msra.mxu0 0
        %1091 = vmatpush.bf16.msra.mxu0 %v1046
        %1092 = vmatmul.bf16.gmra.mxu0 %v1082
        %v1093 = vpop.f32.mrf.mxu0
        %v1094 = vadd.f32 %v1065, %v1093
        %v1095 = vpop.f32.mrf.mxu0
        %1096 = vdwg.mxu0
        %1097 = vmatpush.bf16.msra.mxu0 0
        %1098 = vmatpush.bf16.msra.mxu0 0
        %1099 = vmatpush.bf16.msra.mxu0 0
        %1100 = vmatpush.bf16.msra.mxu0 0
        %1101 = vmatpush.bf16.msra.mxu0 0
        %1102 = vmatpush.bf16.msra.mxu0 0
        %1103 = vmatpush.bf16.msra.mxu0 0
        %1104 = vmatpush.bf16.msra.mxu0 %v1047
        %1105 = vmatmul.bf16.gmra.mxu0 %v1082
        %v1106 = vpop.f32.mrf.mxu0
        %v1107 = vadd.f32 %v1078, %v1106
        %v1108 = vpop.f32.mrf.mxu0
        %1109 = vdwg.mxu0
        %v1110 = vld [vmem:[%s10] sm:$0xff]
        %1112 = vset.pattern.permute.xlu0 0
        %1113 = vperm.xlu0 %1112, %v1110
        %v1114 = vpop.permute.xlu0 %1113
        %v1116 = vadd.f32 %v1094, %v1114
        %v1117 = vadd.f32 %v1107, %v1114
        %s1118 = scalar_lea.vmem %s11, 32
        %v1119 = vld [vmem:[%s1118] sm:$0xff]
        %1121 = vset.pattern.permute.xlu0 0
        %1122 = vperm.xlu0 %1121, %v1119
        %v1123 = vpop.permute.xlu0 %1122
        %v1125 = vmul.f32 %v1116, %v1123
        %v1126 = vmul.f32 %v1117, %v1123
        %1127 = vrot.lane.b32.xlu0 %v1116, 17
        %v1128 = vpop.permute.xlu0 %1127
        %1129 = vrot.lane.b32.xlu0 %v1117, 17
        %v1130 = vpop.permute.xlu0 %1129
        %v1131 = vsel %vm501, %v1128, %v1130
        %v1132 = vsel %vm501, %v1130, %v1128
        %v1133 = vmul.f32 %v1132, %v508
        %v1134 = vmul.f32 %v1131, %v509
        %v1135 = vld [vmem:[%s11] sm:$0xff]
        %1137 = vset.pattern.permute.xlu0 0
        %1138 = vperm.xlu0 %1137, %v1135
        %v1139 = vpop.permute.xlu0 %1138
        %v1141 = vmul.f32 %v1133, %v1139
        %v1142 = vmul.f32 %v1134, %v1139
        %v1143 = vadd.f32 %v1125, %v1141
        %v1144 = vadd.f32 %v1126, %v1142
        %1145 = vrot.lane.b32.xlu0 %v1116, 16
        %v1146 = vpop.permute.xlu0 %1145
        %1147 = vrot.lane.b32.xlu0 %v1117, 16
        %v1148 = vpop.permute.xlu0 %1147
        %v1149 = vsel %vm544, %v1146, %v1148
        %v1150 = vsel %vm544, %v1148, %v1146
        %v1151 = vmul.f32 %v1150, %v552
        %v1152 = vmul.f32 %v1149, %v553
        %s1153 = scalar_lea.vmem %s11, 8
        %v1154 = vld [vmem:[%s1153] sm:$0xff]
        %1156 = vset.pattern.permute.xlu0 0
        %1157 = vperm.xlu0 %1156, %v1154
        %v1158 = vpop.permute.xlu0 %1157
        %v1160 = vmul.f32 %v1151, %v1158
        %v1161 = vmul.f32 %v1152, %v1158
        %v1162 = vadd.f32 %v1143, %v1160
        %v1163 = vadd.f32 %v1144, %v1161
        %1164 = vrot.lane.b32.xlu0 %v1116, 15
        %v1165 = vpop.permute.xlu0 %1164
        %1166 = vrot.lane.b32.xlu0 %v1117, 15
        %v1167 = vpop.permute.xlu0 %1166
        %v1168 = vsel %vm589, %v1165, %v1167
        %v1169 = vsel %vm589, %v1167, %v1165
        %v1170 = vmul.f32 %v1169, %v597
        %v1171 = vmul.f32 %v1168, %v598
        %s1172 = scalar_lea.vmem %s11, 16
        %v1173 = vld [vmem:[%s1172] sm:$0xff]
        %1175 = vset.pattern.permute.xlu0 0
        %1176 = vperm.xlu0 %1175, %v1173
        %v1177 = vpop.permute.xlu0 %1176
        %v1179 = vmul.f32 %v1170, %v1177
        %v1180 = vmul.f32 %v1171, %v1177
        %v1181 = vadd.f32 %v1162, %v1179
        %v1182 = vadd.f32 %v1163, %v1180
        %1183 = vrot.lane.b32.xlu0 %v1116, 1
        %v1184 = vpop.permute.xlu0 %1183
        %1185 = vrot.lane.b32.xlu0 %v1117, 1
        %v1186 = vpop.permute.xlu0 %1185
        %v1187 = vsel %vm634, %v1184, %v1186
        %v1188 = vsel %vm634, %v1186, %v1184
        %v1189 = vmul.f32 %v1188, %v642
        %v1190 = vmul.f32 %v1187, %v643
        %s1191 = scalar_lea.vmem %s11, 24
        %v1192 = vld [vmem:[%s1191] sm:$0xff]
        %1194 = vset.pattern.permute.xlu0 0
        %1195 = vperm.xlu0 %1194, %v1192
        %v1196 = vpop.permute.xlu0 %1195
        %v1198 = vmul.f32 %v1189, %v1196
        %v1199 = vmul.f32 %v1190, %v1196
        %v1200 = vadd.f32 %v1181, %v1198
        %v1201 = vadd.f32 %v1182, %v1199
        %1202 = vrot.lane.b32.xlu0 %v1116, 127
        %v1203 = vpop.permute.xlu0 %1202
        %1204 = vrot.lane.b32.xlu0 %v1117, 127
        %v1205 = vpop.permute.xlu0 %1204
        %v1206 = vsel %vm679, %v1203, %v1205
        %v1207 = vsel %vm679, %v1205, %v1203
        %v1208 = vmul.f32 %v1206, %v687
        %v1209 = vmul.f32 %v1207, %v688
        %s1210 = scalar_lea.vmem %s11, 40
        %v1211 = vld [vmem:[%s1210] sm:$0xff]
        %1213 = vset.pattern.permute.xlu0 0
        %1214 = vperm.xlu0 %1213, %v1211
        %v1215 = vpop.permute.xlu0 %1214
        %v1217 = vmul.f32 %v1208, %v1215
        %v1218 = vmul.f32 %v1209, %v1215
        %v1219 = vadd.f32 %v1200, %v1217
        %v1220 = vadd.f32 %v1201, %v1218
        %1221 = vrot.lane.b32.xlu0 %v1116, 113
        %v1222 = vpop.permute.xlu0 %1221
        %1223 = vrot.lane.b32.xlu0 %v1117, 113
        %v1224 = vpop.permute.xlu0 %1223
        %v1225 = vsel %vm724, %v1222, %v1224
        %v1226 = vsel %vm724, %v1224, %v1222
        %v1227 = vmul.f32 %v1225, %v732
        %v1228 = vmul.f32 %v1226, %v733
        %s1229 = scalar_lea.vmem %s11, 48
        %v1230 = vld [vmem:[%s1229] sm:$0xff]
        %1232 = vset.pattern.permute.xlu0 0
        %1233 = vperm.xlu0 %1232, %v1230
        %v1234 = vpop.permute.xlu0 %1233
        %v1236 = vmul.f32 %v1227, %v1234
        %v1237 = vmul.f32 %v1228, %v1234
        %v1238 = vadd.f32 %v1219, %v1236
        %v1239 = vadd.f32 %v1220, %v1237
        %1240 = vrot.lane.b32.xlu0 %v1116, 112
        %v1241 = vpop.permute.xlu0 %1240
        %1242 = vrot.lane.b32.xlu0 %v1117, 112
        %v1243 = vpop.permute.xlu0 %1242
        %v1244 = vsel %vm769, %v1241, %v1243
        %v1245 = vsel %vm769, %v1243, %v1241
        %v1246 = vmul.f32 %v1244, %v777
        %v1247 = vmul.f32 %v1245, %v778
        %s1248 = scalar_lea.vmem %s11, 56
        %v1249 = vld [vmem:[%s1248] sm:$0xff]
        %1251 = vset.pattern.permute.xlu0 0
        %1252 = vperm.xlu0 %1251, %v1249
        %v1253 = vpop.permute.xlu0 %1252
        %v1255 = vmul.f32 %v1246, %v1253
        %v1256 = vmul.f32 %v1247, %v1253
        %v1257 = vadd.f32 %v1238, %v1255
        %v1258 = vadd.f32 %v1239, %v1256
        %1259 = vrot.lane.b32.xlu0 %v1116, 111
        %v1260 = vpop.permute.xlu0 %1259
        %1261 = vrot.lane.b32.xlu0 %v1117, 111
        %v1262 = vpop.permute.xlu0 %1261
        %v1263 = vsel %vm814, %v1260, %v1262
        %v1264 = vsel %vm814, %v1262, %v1260
        %v1265 = vmul.f32 %v1263, %v822
        %v1266 = vmul.f32 %v1264, %v823
        %s1267 = scalar_lea.vmem %s11, 64
        %v1268 = vld [vmem:[%s1267] sm:$0xff]
        %1270 = vset.pattern.permute.xlu0 0
        %1271 = vperm.xlu0 %1270, %v1268
        %v1272 = vpop.permute.xlu0 %1271
        %v1274 = vmul.f32 %v1265, %v1272
        %v1275 = vmul.f32 %v1266, %v1272
        %v1276 = vadd.f32 %v1257, %v1274
        %v1277 = vadd.f32 %v1258, %v1275
        %s1278 = scalar_lea.vmem %s10, 8
        %v1279 = vld [vmem:[%s1278] sm:$0xff]
        %1281 = vset.pattern.permute.xlu0 0
        %1282 = vperm.xlu0 %1281, %v1279
        %v1283 = vpop.permute.xlu0 %1282
        %v1285 = vadd.f32 %v1276, %v1283
        %v1286 = vadd.f32 %v1277, %v1283
        %v1287 = vadd.f32 %v1116, %v413
        %v1288 = vadd.f32 %v1117, %v414
        %1289 = vst [vmem:[%s406] sm:$0xff] %v1287
        %1290 = vst [vmem:[%s406 + $0x8] sm:$0xff] %v1288
        %v1291 = vadd.f32 %v1285, %v415
        %v1292 = vadd.f32 %v1286, %v416
        %1293 = vst [vmem:[%s406 + $0x10] sm:$0xff] %v1291
        %1294 = vst [vmem:[%s406 + $0x18] sm:$0xff] %v1292
        %s1295 = sand.u32 %s291, 1
        %s1296 = scalar_lea.sflag [#allocation3], %s1295
        %s1297 = sand.u32 %s291, 1
        %s1298 = smul.addr %s1297, 32
        %s1299 = scalar_lea.vmem [#allocation2], %s1298
        // Predicated region
        $region69: #{tpu_custom_call.1} parent=67 // pred_check
          %p1300 = pneg %p301
        $region70: #{tpu_custom_call.1} parent=67 // pred_check_branch
          %1302 = sbr.rel (%p1300) target = $region72
        $region71: #{tpu_custom_call.1} parent=67 // pred_region
          %1304 = vsyncadd %s1296, 0
          %s1305 = smul.addr %s26, 4
          %s1306 = smul.addr %s1305, 8
          %s1307 = scalar_lea.hbm %s12, %s1306
          %s1308 = sshll.u32 %s1299, 4
          %s1309 = int_to_ptr.vmem [resolvable:$true] %s1308
          %s1310 = sshll.u32 %s1307, 4
          %s1311 = int_to_ptr.hbm [resolvable:$true] %s1310
          %1316 = dma.vmem_to_hbm [thread:$0]  %s1309, 512, %s1311, %s1296, 256, 256, 16
        $region72: #{tpu_custom_call.1} parent=67 // pred_fallthru
          _
      $region68: #{tpu_custom_call.1} parent=5 // pred_fallthru
        _
      %p1317 = scmp.le.s32.totalorder 2, %s21
      // Predicated region
      $region73: #{tpu_custom_call.1} parent=5 // pred_check
        %p1318 = pneg %p1317
      $region74: #{tpu_custom_call.1} parent=5 // pred_check_branch
        %1320 = sbr.rel (%p1318) target = $region76
      $region75: #{tpu_custom_call.1} parent=5 // pred_region
        %s1321 = ssub.s32 %s21, 2
        // Predicated region
        $region77: #{tpu_custom_call.1} parent=75 // pred_check
          %p1322 = pneg %p307
        $region78: #{tpu_custom_call.1} parent=75 // pred_check_branch
          %1324 = sbr.rel (%p1322) target = $region80
        $region79: #{tpu_custom_call.1} parent=75 // pred_region
          %s1325 = sand.u32 %s292, 1
          %s1326 = scalar_lea.sflag [#allocation3], %s1325
          %s1327 = sand.u32 %s292, 1
          %s1328 = smul.addr %s1327, 32
          %s1329 = scalar_lea.vmem [#allocation2], %s1328
          %1331 = dma.done %s1326, 512
        $region80: #{tpu_custom_call.1} parent=75 // pred_fallthru
          _
      $region76: #{tpu_custom_call.1} parent=5 // pred_fallthru
        _
    $region6: #{tpu_custom_call.1} parent=1 // loop_footer
      %s25 = sadd.s32 1, %s21
    $region7: #{tpu_custom_call.1} parent=1 // loop_footer_branch
      %20 = sbr.rel target = $region3
    $region8: #{tpu_custom_call.1} parent=1 // loop_exit
      _
    %1332 = vsyncpa [#allocation3], 1
    %s1333 = scalar_lea.sflag [#allocation3], 1
    %1334 = vsyncpa %s1333, 1

</llo_original>
